<compile_context>
chip_gen: v7x
topology: tpu7x:2x2x1
jax: 0.10.0
libtpu: 0.0.40
codegen_flags: <defaults>
</compile_context>

<pallas_src>
import numpy as np
import jax
import jax.numpy as jnp
from jax.experimental import pallas as pl
from jax.experimental.pallas import tpu as pltpu


# ----------------------------------------------------------------------------
# Pallas kernel: full GCNClassifier forward for GB graphs per grid step.
# ----------------------------------------------------------------------------
def gcn_classifier_kernel(a_ref,    # [1, GBn, GBn] bf16  block-diag normalized adjacency
                          xw1_ref,  # [1, GBn, Hp]  bf16  X @ W1 (hoisted to wrapper)
                          p_ref,    # [1, 8, GBn]   bf16  mean-pool matrix (graph per sublane)
                          b1_ref,   # [1, Hp]       f32
                          w2_ref,   # [Hp, Hp]      bf16
                          b2_ref,   # [1, Hp]       f32
                          wl_ref,   # [Hp, Cp]      bf16
                          bl_ref,   # [1, Cp]       f32
                          o_ref):   # [1, 8, Cp]    f32   dense logits tile
    a = a_ref[0]                                   # [GBn, GBn]
    xw1 = xw1_ref[0]                               # [GBn, Hp]

    # ---- GCNConv 1: A_hat @ (X W1) + b1, ReLU --------------------------------
    h = jnp.dot(a, xw1, preferred_element_type=jnp.float32)
    h = jnp.maximum(h + b1_ref[...], 0.0)          # [GBn, Hp] f32

    # ---- GCNConv 2: A_hat @ (H W2) + b2, ReLU --------------------------------
    hw = jnp.dot(h.astype(jnp.bfloat16), w2_ref[...],
                 preferred_element_type=jnp.float32)
    h2 = jnp.dot(a, hw.astype(jnp.bfloat16),
                 preferred_element_type=jnp.float32)
    h2 = jnp.maximum(h2 + b2_ref[...], 0.0)        # [GBn, Hp] f32

    # ---- global_mean_pool for all GB graphs at once: P [8,GBn] @ H2 [GBn,Hp] --
    g = jnp.dot(p_ref[0], h2.astype(jnp.bfloat16),
                preferred_element_type=jnp.float32)          # [8, Hp]

    # ---- classifier: [8, Hp] @ [Hp, Cp] + bl -> one dense [8, Cp] tile --------
    logits = jnp.dot(g.astype(jnp.bfloat16), wl_ref[...],
                     preferred_element_type=jnp.float32) + bl_ref[...]
    o_ref[...] = logits[None]                      # unmasked, lane/sublane-dense store


def gcn_classifier_forward(a_blk, xw1, pool, b1, w2, b2, wl, bl, gb, n_cls):
    n_tiles, gbn, _ = a_blk.shape
    h_pad = w2.shape[1]
    c_pad = wl.shape[1]
    out = pl.pallas_call(
        gcn_classifier_kernel,
        out_shape=jax.ShapeDtypeStruct((n_tiles, 8, c_pad), jnp.float32),
        grid_spec=pltpu.PrefetchScalarGridSpec(
            num_scalar_prefetch=0,
            grid=(n_tiles,),
            in_specs=[
                pl.BlockSpec((1, gbn, gbn),   lambda t: (t, 0, 0)),   # A_hat block-diag
                pl.BlockSpec((1, gbn, h_pad), lambda t: (t, 0, 0)),   # X @ W1
                pl.BlockSpec((1, 8, gbn),     lambda t: (t, 0, 0)),   # pool matrix
                pl.BlockSpec((1, h_pad),      lambda t: (0, 0)),      # b1 (resident)
                pl.BlockSpec((h_pad, h_pad),  lambda t: (0, 0)),      # W2
                pl.BlockSpec((1, h_pad),      lambda t: (0, 0)),      # b2
                pl.BlockSpec((h_pad, c_pad),  lambda t: (0, 0)),      # Wl
                pl.BlockSpec((1, c_pad),      lambda t: (0, 0)),      # bl
            ],
            out_specs=pl.BlockSpec((1, 8, c_pad), lambda t: (t, 0, 0)),
        ),
        compiler_params=pltpu.CompilerParams(
            dimension_semantics=("parallel",)),    # 2 steps -> both v7x TensorCores
    )(a_blk, xw1, pool, b1, w2, b2, wl, bl)
    # first gb sublane rows per tile carry real graphs; first n_cls lanes are real
    return out[:, :gb, :n_cls].reshape(n_tiles * gb, n_cls)


# ----------------------------------------------------------------------------
# Glue (numpy): batched graph -> block-diag A_hat tiles + pooling matrices.
# ----------------------------------------------------------------------------
def build_graph_operands(edge_index, batch, num_graphs, n_per_g, gb):
    """Returns:
       a_per_g [G, n, n]          per-graph D^-1/2 (A + I) D^-1/2 (for the f32 ref)
       a_blk   [G//gb, gb*n, gb*n] block-diagonal packing, gb graphs per tile
       pool    [G//gb, 8, gb*n]    mean-pool matrix, one graph per sublane row
    """
    assert num_graphs % gb == 0 and gb <= 8
    ei = np.asarray(edge_index)
    b = np.asarray(batch)
    n_tiles = num_graphs // gb
    gbn = gb * n_per_g
    a_per_g = np.zeros((num_graphs, n_per_g, n_per_g), np.float32)
    a_blk = np.zeros((n_tiles, gbn, gbn), np.float32)
    pool = np.zeros((n_tiles, 8, gbn), np.float32)
    for g in range(num_graphs):
        nodes = np.where(b == g)[0]
        off = int(nodes.min())
        mask = (b[ei[0]] == g)
        src = ei[0, mask] - off
        dst = ei[1, mask] - off
        a = np.zeros((n_per_g, n_per_g), np.float32)
        np.add.at(a, (dst, src), 1.0)               # aggregate j -> i at row i
        a += np.eye(n_per_g, dtype=np.float32)      # self loops
        deg = a.sum(axis=1)
        dinv = np.where(deg > 0, 1.0 / np.sqrt(deg), 0.0)
        a_hat = a * dinv[:, None] * dinv[None, :]
        a_per_g[g] = a_hat
        t, s = divmod(g, gb)
        r0 = s * n_per_g
        a_blk[t, r0:r0 + n_per_g, r0:r0 + n_per_g] = a_hat
        pool[t, s, r0:r0 + len(nodes)] = 1.0 / len(nodes)
    return a_per_g, a_blk, pool


# ----------------------------------------------------------------------------
# References.
# ----------------------------------------------------------------------------
def reference_bf16(a_blk, xw1, pool, b1, w2, b2, wl, bl):
    """Mirrors the kernel's bf16-input / f32-accumulate cast pattern exactly."""
    f32, bf16 = jnp.float32, jnp.bfloat16
    h = jnp.einsum('tij,tjh->tih', a_blk, xw1, preferred_element_type=f32)
    h = jnp.maximum(h + b1, 0.0)
    hw = jnp.einsum('tih,hk->tik', h.astype(bf16), w2, preferred_element_type=f32)
    h2 = jnp.einsum('tij,tjk->tik', a_blk, hw.astype(bf16), preferred_element_type=f32)
    h2 = jnp.maximum(h2 + b2, 0.0)
    pooled = jnp.einsum('tsn,tnh->tsh', pool, h2.astype(bf16), preferred_element_type=f32)
    return jnp.einsum('tsh,hc->tsc', pooled.astype(bf16), wl,
                      preferred_element_type=f32) + bl


def reference_f32(a_g, x_g, w1, b1, w2, b2, wl, bl):
    """Pure f32, unpadded, conventional GCNConv association A @ (X W) + b."""
    h = jnp.einsum('gij,gjh->gih', a_g, x_g @ w1) + b1
    h = jnp.maximum(h, 0.0)
    h = jnp.einsum('gij,gjh->gih', a_g, h @ w2) + b2
    h = jnp.maximum(h, 0.0)
    pooled = h.mean(axis=1)                 # all n nodes per graph are real here
    return pooled @ wl + bl


if __name__ == "__main__":
    # --- small, deterministic problem sizes ----------------------------------
    T_LEN, HIDDEN, N_CLASS = 16, 64, 4          # module: in_feat, hidden, n_cls
    N_PER_G, N_GRAPH = 64, 8                    # 8 graphs of 64 nodes
    GB = 4                                      # graphs per grid step -> 256x256 A tile
                                                # (use GB=2 -> 128x128 on v5e)
    H_PAD = C_PAD = 128                         # lane-padded hidden / class dims
    N_NODES = N_PER_G * N_GRAPH
    N_TILES = N_GRAPH // GB
    GBN = GB * N_PER_G

    key = jax.random.PRNGKey(0)
    k_x, k_w1, k_b1, k_w2, k_b2, k_wl, k_bl = jax.random.split(key, 7)

    # --- synthetic batched graph: per-graph undirected ring -------------------
    edges = []
    for g in range(N_GRAPH):
        off = g * N_PER_G
        for i in range(N_PER_G):
            j = (i + 1) % N_PER_G
            edges.append((off + i, off + j))
            edges.append((off + j, off + i))
    edge_index = np.array(edges, dtype=np.int32).T                  # [2, E]
    batch = np.repeat(np.arange(N_GRAPH), N_PER_G).astype(np.int32)

    x = jax.random.normal(k_x, (N_NODES, T_LEN), jnp.float32)       # data.x

    # --- deterministic parameter init (glorot-ish) ----------------------------
    def glorot(k, shape):
        s = jnp.sqrt(6.0 / (shape[0] + shape[1]))
        return jax.random.uniform(k, shape, jnp.float32, -s, s)

    w1 = glorot(k_w1, (T_LEN, HIDDEN))
    b1 = jax.random.normal(k_b1, (1, HIDDEN), jnp.float32) * 0.01
    w2 = glorot(k_w2, (HIDDEN, HIDDEN))
    b2 = jax.random.normal(k_b2, (1, HIDDEN), jnp.float32) * 0.01
    wl = glorot(k_wl, (HIDDEN, N_CLASS))
    bl = jax.random.normal(k_bl, (1, N_CLASS), jnp.float32) * 0.01

    # --- graph-structure glue: block-diag tiles + pooling matrices ------------
    # TODO(synk): edge_index -> normalized adjacency is host-side preprocessing,
    # not part of the Pallas kernel (sparse scatter_add has no clean MXU form).
    a_per_g, a_blk_np, pool_np = build_graph_operands(
        edge_index, batch, N_GRAPH, N_PER_G, GB)
    a_per_g = jnp.asarray(a_per_g)                 # [G, n, n]        (f32 ref)
    a_blk_f32 = jnp.asarray(a_blk_np)              # [T, GBn, GBn]
    pool_f32 = jnp.asarray(pool_np)                # [T, 8, GBn]

    # --- hoist X @ W1 to XLA (removes first-layer padding & 1/3 of MXU work) --
    xw1_f32 = (x @ w1).reshape(N_TILES, GBN, HIDDEN)
    xw1_pad = jnp.zeros((N_TILES, GBN, H_PAD), jnp.float32).at[:, :, :HIDDEN].set(xw1_f32)

    # --- pad hidden / class dims of the remaining params to 128 lanes ---------
    def pad2(m, shape):
        return jnp.zeros(shape, jnp.float32).at[:m.shape[0], :m.shape[1]].set(m)

    b1p = pad2(b1, (1, H_PAD))
    w2p, b2p = pad2(w2, (H_PAD, H_PAD)), pad2(b2, (1, H_PAD))
    wlp, blp = pad2(wl, (H_PAD, C_PAD)), pad2(bl, (1, C_PAD))

    bf16 = jnp.bfloat16
    a_bf, xw1_bf, p_bf = a_blk_f32.astype(bf16), xw1_pad.astype(bf16), pool_f32.astype(bf16)
    w2_bf, wl_bf = w2p.astype(bf16), wlp.astype(bf16)

    # --- run Pallas kernel -----------------------------------------------------
    logits = gcn_classifier_forward(a_bf, xw1_bf, p_bf,
                                    b1p, w2_bf, b2p, wl_bf, blp, GB, N_CLASS)
    logits = jax.block_until_ready(logits)          # [G, n_cls]

    # --- correctness: vs bf16-mirrored reference (tight) ------------------------
    ref_bf = reference_bf16(a_bf, xw1_bf, p_bf, b1p, w2_bf, b2p, wl_bf, blp)
    ref_bf = ref_bf[:, :GB, :N_CLASS].reshape(N_GRAPH, N_CLASS)
    np.testing.assert_allclose(np.asarray(logits), np.asarray(ref_bf),
                               rtol=1e-2, atol=1e-2)

    # --- correctness: vs pure-f32 unpadded semantics (loose, bf16 tolerance) ----
    x_g = x.reshape(N_GRAPH, N_PER_G, T_LEN)
    ref32 = reference_f32(a_per_g, x_g, w1, b1, w2, b2, wl, bl)
    np.testing.assert_allclose(np.asarray(logits), np.asarray(ref32),
                               rtol=5e-2, atol=5e-2)

    print("KERNEL_OK")
</pallas_src>

<mosaic_0001>
module attributes {stable_mosaic.version = 11 : i64} {
  func.func @gcn_classifier_kernel(%arg0: i32, %arg1: memref<1x256x256xbf16, #tpu.memory_space<vmem>>, %arg2: memref<1x256x128xbf16, #tpu.memory_space<vmem>>, %arg3: memref<1x8x256xbf16, #tpu.memory_space<vmem>>, %arg4: memref<1x128xf32, #tpu.memory_space<vmem>>, %arg5: memref<128x128xbf16, #tpu.memory_space<vmem>>, %arg6: memref<1x128xf32, #tpu.memory_space<vmem>>, %arg7: memref<128x128xbf16, #tpu.memory_space<vmem>>, %arg8: memref<1x128xf32, #tpu.memory_space<vmem>>, %arg9: memref<1x8x128xf32, #tpu.memory_space<vmem>>) attributes {dimension_semantics = [#tpu.dimension_semantics<parallel>], iteration_bounds = array<i64: 2>, scalar_prefetch = 0 : i64, scratch_operands = 0 : i64, tpu.core_type = #tpu.core_type<tc>, window_params = [{transform_indices = @transform_0, window_bounds = array<i64: 1, 256, 256>}, {transform_indices = @transform_1, window_bounds = array<i64: 1, 256, 128>}, {transform_indices = @transform_2, window_bounds = array<i64: 1, 8, 256>}, {pipeline_mode = #tpu.pipeline_mode<synchronous>, transform_indices = @transform_3, window_bounds = array<i64: 1, 128>}, {pipeline_mode = #tpu.pipeline_mode<synchronous>, transform_indices = @transform_4, window_bounds = array<i64: 128, 128>}, {pipeline_mode = #tpu.pipeline_mode<synchronous>, transform_indices = @transform_5, window_bounds = array<i64: 1, 128>}, {pipeline_mode = #tpu.pipeline_mode<synchronous>, transform_indices = @transform_6, window_bounds = array<i64: 128, 128>}, {pipeline_mode = #tpu.pipeline_mode<synchronous>, transform_indices = @transform_7, window_bounds = array<i64: 1, 128>}, {transform_indices = @transform_8, window_bounds = array<i64: 1, 8, 128>}]} {
    %c0 = arith.constant 0 : index
    %c0_0 = arith.constant 0 : index
    %c0_1 = arith.constant 0 : index
    %0 = vector.load %arg1[%c0, %c0_0, %c0_1] : memref<1x256x256xbf16, #tpu.memory_space<vmem>>, vector<1x256x256xbf16>
    %1 = vector.shape_cast %0 : vector<1x256x256xbf16> to vector<256x256xbf16>
    %c0_2 = arith.constant 0 : index
    %c0_3 = arith.constant 0 : index
    %c0_4 = arith.constant 0 : index
    %2 = vector.load %arg2[%c0_2, %c0_3, %c0_4] : memref<1x256x128xbf16, #tpu.memory_space<vmem>>, vector<1x256x128xbf16>
    %3 = vector.shape_cast %2 : vector<1x256x128xbf16> to vector<256x128xbf16>
    %cst = arith.constant dense<0.000000e+00> : vector<256x128xf32>
    %4 = tpu.matmul %1, %3, %cst {dimension_numbers = #tpu.dot_dimension_numbers<[1], [0], [0], [1], [0, 0, 1, 1], [], []>} : vector<256x256xbf16>, vector<256x128xbf16>, vector<256x128xf32> -> vector<256x128xf32>
    %c0_5 = arith.constant 0 : index
    %c0_6 = arith.constant 0 : index
    %5 = vector.load %arg4[%c0_5, %c0_6] : memref<1x128xf32, #tpu.memory_space<vmem>>, vector<1x128xf32>
    %6 = vector.broadcast %5 : vector<1x128xf32> to vector<256x128xf32>
    %7 = arith.addf %4, %6 : vector<256x128xf32>
    %cst_7 = arith.constant 0.000000e+00 : f32
    %8 = vector.broadcast %cst_7 : f32 to vector<256x128xf32>
    %9 = arith.maximumf %7, %8 : vector<256x128xf32>
    %10 = arith.truncf %9 : vector<256x128xf32> to vector<256x128xbf16>
    %c0_8 = arith.constant 0 : index
    %c0_9 = arith.constant 0 : index
    %11 = vector.load %arg5[%c0_8, %c0_9] : memref<128x128xbf16, #tpu.memory_space<vmem>>, vector<128x128xbf16>
    %cst_10 = arith.constant dense<0.000000e+00> : vector<256x128xf32>
    %12 = tpu.matmul %10, %11, %cst_10 {dimension_numbers = #tpu.dot_dimension_numbers<[1], [0], [0], [1], [0, 0, 1, 1], [], []>} : vector<256x128xbf16>, vector<128x128xbf16>, vector<256x128xf32> -> vector<256x128xf32>
    %13 = arith.truncf %12 : vector<256x128xf32> to vector<256x128xbf16>
    %cst_11 = arith.constant dense<0.000000e+00> : vector<256x128xf32>
    %14 = tpu.matmul %1, %13, %cst_11 {dimension_numbers = #tpu.dot_dimension_numbers<[1], [0], [0], [1], [0, 0, 1, 1], [], []>} : vector<256x256xbf16>, vector<256x128xbf16>, vector<256x128xf32> -> vector<256x128xf32>
    %c0_12 = arith.constant 0 : index
    %c0_13 = arith.constant 0 : index
    %15 = vector.load %arg6[%c0_12, %c0_13] : memref<1x128xf32, #tpu.memory_space<vmem>>, vector<1x128xf32>
    %16 = vector.broadcast %15 : vector<1x128xf32> to vector<256x128xf32>
    %17 = arith.addf %14, %16 : vector<256x128xf32>
    %cst_14 = arith.constant 0.000000e+00 : f32
    %18 = vector.broadcast %cst_14 : f32 to vector<256x128xf32>
    %19 = arith.maximumf %17, %18 : vector<256x128xf32>
    %c0_15 = arith.constant 0 : index
    %c0_16 = arith.constant 0 : index
    %c0_17 = arith.constant 0 : index
    %20 = vector.load %arg3[%c0_15, %c0_16, %c0_17] : memref<1x8x256xbf16, #tpu.memory_space<vmem>>, vector<1x8x256xbf16>
    %21 = vector.shape_cast %20 : vector<1x8x256xbf16> to vector<8x256xbf16>
    %22 = arith.truncf %19 : vector<256x128xf32> to vector<256x128xbf16>
    %cst_18 = arith.constant dense<0.000000e+00> : vector<8x128xf32>
    %23 = tpu.matmul %21, %22, %cst_18 {dimension_numbers = #tpu.dot_dimension_numbers<[1], [0], [0], [1], [0, 0, 1, 1], [], []>} : vector<8x256xbf16>, vector<256x128xbf16>, vector<8x128xf32> -> vector<8x128xf32>
    %24 = arith.truncf %23 : vector<8x128xf32> to vector<8x128xbf16>
    %c0_19 = arith.constant 0 : index
    %c0_20 = arith.constant 0 : index
    %25 = vector.load %arg7[%c0_19, %c0_20] : memref<128x128xbf16, #tpu.memory_space<vmem>>, vector<128x128xbf16>
    %cst_21 = arith.constant dense<0.000000e+00> : vector<8x128xf32>
    %26 = tpu.matmul %24, %25, %cst_21 {dimension_numbers = #tpu.dot_dimension_numbers<[1], [0], [0], [1], [0, 0, 1, 1], [], []>} : vector<8x128xbf16>, vector<128x128xbf16>, vector<8x128xf32> -> vector<8x128xf32>
    %c0_22 = arith.constant 0 : index
    %c0_23 = arith.constant 0 : index
    %27 = vector.load %arg8[%c0_22, %c0_23] : memref<1x128xf32, #tpu.memory_space<vmem>>, vector<1x128xf32>
    %28 = vector.broadcast %27 : vector<1x128xf32> to vector<8x128xf32>
    %29 = arith.addf %26, %28 : vector<8x128xf32>
    %30 = vector.shape_cast %29 : vector<8x128xf32> to vector<1x8x128xf32>
    %c0_24 = arith.constant 0 : index
    %c0_25 = arith.constant 0 : index
    %c0_26 = arith.constant 0 : index
    %31 = vector.load %arg9[%c0_24, %c0_25, %c0_26] : memref<1x8x128xf32, #tpu.memory_space<vmem>>, vector<1x8x128xf32>
    tpu.vector_store %arg9[%c0_24, %c0_25, %c0_26], %30 {strides = array<i32>} : memref<1x8x128xf32, #tpu.memory_space<vmem>>, vector<1x8x128xf32>,
    return
  }
  func.func @transform_0(%arg0: i32) -> (i32, i32, i32) {
    %c0_i32 = arith.constant 0 : i32
    %c0_i32_0 = arith.constant 0 : i32
    %c0_i32_1 = arith.constant 0 : i32
    return %arg0, %c0_i32, %c0_i32_0 : i32, i32, i32
  }
  func.func @transform_1(%arg0: i32) -> (i32, i32, i32) {
    %c0_i32 = arith.constant 0 : i32
    %c0_i32_0 = arith.constant 0 : i32
    %c0_i32_1 = arith.constant 0 : i32
    return %arg0, %c0_i32, %c0_i32_0 : i32, i32, i32
  }
  func.func @transform_2(%arg0: i32) -> (i32, i32, i32) {
    %c0_i32 = arith.constant 0 : i32
    %c0_i32_0 = arith.constant 0 : i32
    %c0_i32_1 = arith.constant 0 : i32
    return %arg0, %c0_i32, %c0_i32_0 : i32, i32, i32
  }
  func.func @transform_3(%arg0: i32) -> (i32, i32) {
    %c0_i32 = arith.constant 0 : i32
    %c0_i32_0 = arith.constant 0 : i32
    %c0_i32_1 = arith.constant 0 : i32
    return %c0_i32, %c0_i32_0 : i32, i32
  }
  func.func @transform_4(%arg0: i32) -> (i32, i32) {
    %c0_i32 = arith.constant 0 : i32
    %c0_i32_0 = arith.constant 0 : i32
    %c0_i32_1 = arith.constant 0 : i32
    return %c0_i32, %c0_i32_0 : i32, i32
  }
  func.func @transform_5(%arg0: i32) -> (i32, i32) {
    %c0_i32 = arith.constant 0 : i32
    %c0_i32_0 = arith.constant 0 : i32
    %c0_i32_1 = arith.constant 0 : i32
    return %c0_i32, %c0_i32_0 : i32, i32
  }
  func.func @transform_6(%arg0: i32) -> (i32, i32) {
    %c0_i32 = arith.constant 0 : i32
    %c0_i32_0 = arith.constant 0 : i32
    %c0_i32_1 = arith.constant 0 : i32
    return %c0_i32, %c0_i32_0 : i32, i32
  }
  func.func @transform_7(%arg0: i32) -> (i32, i32) {
    %c0_i32 = arith.constant 0 : i32
    %c0_i32_0 = arith.constant 0 : i32
    %c0_i32_1 = arith.constant 0 : i32
    return %c0_i32, %c0_i32_0 : i32, i32
  }
  func.func @transform_8(%arg0: i32) -> (i32, i32, i32) {
    %c0_i32 = arith.constant 0 : i32
    %c0_i32_0 = arith.constant 0 : i32
    %c0_i32_1 = arith.constant 0 : i32
    return %arg0, %c0_i32, %c0_i32_0 : i32, i32, i32
  }
}

</mosaic_0001>

<llo_original>
// kernel: tpu_custom_call.1
$region0: #{tpu_custom_call.1}
  #allocation0 [shape = 'u32[]', space=smem, size = 0x4, offset = 0x4, fixed_abs, tag = 'smem constant byte address 0x4 - core index']
  #allocation1 [shape = 'u32[144,128]{1,0:T(1,128)}', space=vmem, size = 0x12000, scoped, tag = 'internal scratch']
  %s0 = inlined_call_operand.hbm [shape: bf16[2,256,256], index: 0, kind: input, shape index: {}]
  %s1 = inlined_call_operand.hbm [shape: bf16[2,256,128], index: 1, kind: input, shape index: {}]
  %s2 = inlined_call_operand.hbm [shape: bf16[2,8,256], index: 2, kind: input, shape index: {}]
  %s3 = inlined_call_operand.vmem [shape: f32[1,128], index: 3, kind: input, shape index: {}]
  %s4 = inlined_call_operand.hbm [shape: bf16[128,128], index: 4, kind: input, shape index: {}]
  %s5 = inlined_call_operand.vmem [shape: f32[1,128], index: 5, kind: input, shape index: {}]
  %s6 = inlined_call_operand.hbm [shape: bf16[128,128], index: 6, kind: input, shape index: {}]
  %s7 = inlined_call_operand.vmem [shape: f32[1,128], index: 7, kind: input, shape index: {}]
  %s8 = inlined_call_operand.hbm [shape: f32[2,8,128], index: 8, kind: output, shape index: {}]
  %s9 = sld [smem:[#allocation0]]
  $region85: #{tpu_custom_call.1} parent=0
    _
  %s11 = ssub.s32 1, %s9
  %s12 = scalar_select 0, %s11, %s9
  $region1: #{tpu_custom_call.1} parent=0
    #allocation2 [shape = 'u8[262144]{0}', space=vmem, size = 0x40000, scoped, tag = 'input window, operand 0']
    #allocation3 [shape = 's32[2]{0}', space=sflag, size = 0x8, scoped, tag = 'scoped memory for tpu_custom_call.1']
    #allocation4 [shape = 's32[2]{0}', space=sflag, size = 0x8, scoped, tag = 'scoped memory for tpu_custom_call.1']
    #allocation5 [shape = 'u8[131072]{0}', space=vmem, size = 0x20000, scoped, tag = 'input window, operand 1']
    #allocation6 [shape = 's32[2]{0}', space=sflag, size = 0x8, scoped, tag = 'scoped memory for tpu_custom_call.1']
    #allocation7 [shape = 'u8[8192]{0}', space=vmem, size = 0x2000, scoped, tag = 'input window, operand 2']
    #allocation8 [shape = 'u8[32768]{0}', space=vmem, size = 0x8000, scoped, tag = 'input window, operand 4, single buffered']
    #allocation9 [shape = 's32[1]{0}', space=sflag, size = 0x4, scoped, tag = 'scoped memory for tpu_custom_call.1']
    #allocation10 [shape = 'u8[32768]{0}', space=vmem, size = 0x8000, scoped, tag = 'input window, operand 6, single buffered']
    #allocation11 [shape = 'u8[8192]{0}', space=vmem, size = 0x2000, scoped, tag = 'output window, operand 0']
    %13 = vsyncpa [#allocation3], 0
    %s14 = scalar_lea.sflag [#allocation3], 1
    %15 = vsyncpa %s14, 0
    %16 = vsyncpa [#allocation6], 0
    %s17 = scalar_lea.sflag [#allocation6], 1
    %18 = vsyncpa %s17, 0
    %19 = vsyncpa [#allocation9], 0
    %20 = vsyncpa [#allocation4], 0
    %s21 = scalar_lea.sflag [#allocation4], 1
    %22 = vsyncpa %s21, 0
    loop: start=0, step=1, limit=4
    $region2: #{tpu_custom_call.1} parent=1 // loop_pre_header
      _
    $region3: #{tpu_custom_call.1} parent=1 // loop_header
      %s24 = sphi 0, %s28
      %p25 = scmp.ge.s32.totalorder %s24, 4
      %s34 = sphi 0, %s36
      %s37 = sphi 0, %s34
      %s38 = sphi 0, %s37
      %s54 = sphi 0, %s38
      %s60 = sphi 0, %s62
      %s63 = sphi 0, %s60
      %s64 = sphi 0, %s63
      %s80 = sphi 0, %s64
      %s86 = sphi 0, %s88
      %s89 = sphi 0, %s86
      %s90 = sphi 0, %s89
      %s106 = sphi 0, %s90
      %s110 = sphi 0, %s110
      %s112 = sphi 0, %s110
      %s113 = sphi 0, %s112
      %s127 = sphi 0, %s113
      %s131 = sphi 0, %s131
      %s133 = sphi 0, %s131
      %s134 = sphi 0, %s133
      %s148 = sphi 0, %s134
      %s152 = sphi 0, %s152
      %s154 = sphi 0, %s152
      %s155 = sphi 0, %s154
      %s169 = sphi 0, %s155
      %s173 = sphi 0, %s173
      %s175 = sphi 0, %s173
      %s176 = sphi 0, %s175
      %s190 = sphi 0, %s176
      %s194 = sphi 0, %s194
      %s196 = sphi 0, %s194
      %s197 = sphi 0, %s196
      %s211 = sphi 0, %s197
      %s217 = sphi 0, %s219
      %s220 = sphi 0, %s217
      %s221 = sphi 0, %s220
      %s237 = sphi 0, %s221
    $region4: #{tpu_custom_call.1} parent=1 // loop_header_branch
      %27 = sbr.rel (%p25) target = $region8
    $region5: #{tpu_custom_call.1} parent=1 // loop_body
      %s29 = ssub.s32 %s24, 1
      %s30 = ssub.s32 %s24, 2
      %s31 = sadd.s32 %s24, 1
      %s32 = ssub.s32 %s24, %s31
      %p33 = scmp.eq.s32.totalorder %s32, 0
      %s35 = sadd.s32 %s34, 1
      %s36 = scalar_select %p33, %s34, %s35
      %p39 = pneg %p33
      %p40 = scmp.eq.s32.totalorder %s24, 1
      %p41 = por %p39, %p40
      %p42 = scmp.ne.s32.totalorder %s34, %s37
      %p43 = scmp.eq.s32.totalorder %s24, 0
      %p44 = por %p42, %p43
      %p45 = scmp.ne.s32.totalorder %s34, %s37
      %p46 = scmp.eq.s32.totalorder %s29, 1
      %p47 = por %p45, %p46
      %p48 = scmp.ne.s32.totalorder %s37, %s38
      %p49 = scmp.eq.s32.totalorder %s29, 0
      %p50 = por %p48, %p49
      %p51 = scmp.ne.s32.totalorder %s37, %s38
      %p52 = scmp.eq.s32.totalorder %s30, 1
      %p53 = por %p51, %p52
      %p55 = scmp.ne.s32.totalorder %s38, %s54
      %p56 = scmp.eq.s32.totalorder %s30, 0
      %p57 = por %p55, %p56
      %s58 = ssub.s32 %s24, %s31
      %p59 = scmp.eq.s32.totalorder %s58, 0
      %s61 = sadd.s32 %s60, 1
      %s62 = scalar_select %p59, %s60, %s61
      %p65 = pneg %p59
      %p66 = scmp.eq.s32.totalorder %s24, 1
      %p67 = por %p65, %p66
      %p68 = scmp.ne.s32.totalorder %s60, %s63
      %p69 = scmp.eq.s32.totalorder %s24, 0
      %p70 = por %p68, %p69
      %p71 = scmp.ne.s32.totalorder %s60, %s63
      %p72 = scmp.eq.s32.totalorder %s29, 1
      %p73 = por %p71, %p72
      %p74 = scmp.ne.s32.totalorder %s63, %s64
      %p75 = scmp.eq.s32.totalorder %s29, 0
      %p76 = por %p74, %p75
      %p77 = scmp.ne.s32.totalorder %s63, %s64
      %p78 = scmp.eq.s32.totalorder %s30, 1
      %p79 = por %p77, %p78
      %p81 = scmp.ne.s32.totalorder %s64, %s80
      %p82 = scmp.eq.s32.totalorder %s30, 0
      %p83 = por %p81, %p82
      %s84 = ssub.s32 %s24, %s31
      %p85 = scmp.eq.s32.totalorder %s84, 0
      %s87 = sadd.s32 %s86, 1
      %s88 = scalar_select %p85, %s86, %s87
      %p91 = pneg %p85
      %p92 = scmp.eq.s32.totalorder %s24, 1
      %p93 = por %p91, %p92
      %p94 = scmp.ne.s32.totalorder %s86, %s89
      %p95 = scmp.eq.s32.totalorder %s24, 0
      %p96 = por %p94, %p95
      %p97 = scmp.ne.s32.totalorder %s86, %s89
      %p98 = scmp.eq.s32.totalorder %s29, 1
      %p99 = por %p97, %p98
      %p100 = scmp.ne.s32.totalorder %s89, %s90
      %p101 = scmp.eq.s32.totalorder %s29, 0
      %p102 = por %p100, %p101
      %p103 = scmp.ne.s32.totalorder %s89, %s90
      %p104 = scmp.eq.s32.totalorder %s30, 1
      %p105 = por %p103, %p104
      %p107 = scmp.ne.s32.totalorder %s90, %s106
      %p108 = scmp.eq.s32.totalorder %s30, 0
      %p109 = por %p107, %p108
      %s111 = sadd.s32 %s110, 1
      %p114 = scmp.eq.s32.totalorder %s24, 1
      %p115 = scmp.ne.s32.totalorder %s110, %s112
      %p116 = scmp.eq.s32.totalorder %s24, 0
      %p117 = por %p115, %p116
      %p118 = scmp.ne.s32.totalorder %s110, %s112
      %p119 = scmp.eq.s32.totalorder %s29, 1
      %p120 = por %p118, %p119
      %p121 = scmp.ne.s32.totalorder %s112, %s113
      %p122 = scmp.eq.s32.totalorder %s29, 0
      %p123 = por %p121, %p122
      %p124 = scmp.ne.s32.totalorder %s112, %s113
      %p125 = scmp.eq.s32.totalorder %s30, 1
      %p126 = por %p124, %p125
      %p128 = scmp.ne.s32.totalorder %s113, %s127
      %p129 = scmp.eq.s32.totalorder %s30, 0
      %p130 = por %p128, %p129
      %s132 = sadd.s32 %s131, 1
      %p135 = scmp.eq.s32.totalorder %s24, 1
      %p136 = scmp.ne.s32.totalorder %s131, %s133
      %p137 = scmp.eq.s32.totalorder %s24, 0
      %p138 = por %p136, %p137
      %p139 = scmp.ne.s32.totalorder %s131, %s133
      %p140 = scmp.eq.s32.totalorder %s29, 1
      %p141 = por %p139, %p140
      %p142 = scmp.ne.s32.totalorder %s133, %s134
      %p143 = scmp.eq.s32.totalorder %s29, 0
      %p144 = por %p142, %p143
      %p145 = scmp.ne.s32.totalorder %s133, %s134
      %p146 = scmp.eq.s32.totalorder %s30, 1
      %p147 = por %p145, %p146
      %p149 = scmp.ne.s32.totalorder %s134, %s148
      %p150 = scmp.eq.s32.totalorder %s30, 0
      %p151 = por %p149, %p150
      %s153 = sadd.s32 %s152, 1
      %p156 = scmp.eq.s32.totalorder %s24, 1
      %p157 = scmp.ne.s32.totalorder %s152, %s154
      %p158 = scmp.eq.s32.totalorder %s24, 0
      %p159 = por %p157, %p158
      %p160 = scmp.ne.s32.totalorder %s152, %s154
      %p161 = scmp.eq.s32.totalorder %s29, 1
      %p162 = por %p160, %p161
      %p163 = scmp.ne.s32.totalorder %s154, %s155
      %p164 = scmp.eq.s32.totalorder %s29, 0
      %p165 = por %p163, %p164
      %p166 = scmp.ne.s32.totalorder %s154, %s155
      %p167 = scmp.eq.s32.totalorder %s30, 1
      %p168 = por %p166, %p167
      %p170 = scmp.ne.s32.totalorder %s155, %s169
      %p171 = scmp.eq.s32.totalorder %s30, 0
      %p172 = por %p170, %p171
      %s174 = sadd.s32 %s173, 1
      %p177 = scmp.eq.s32.totalorder %s24, 1
      %p178 = scmp.ne.s32.totalorder %s173, %s175
      %p179 = scmp.eq.s32.totalorder %s24, 0
      %p180 = por %p178, %p179
      %p181 = scmp.ne.s32.totalorder %s173, %s175
      %p182 = scmp.eq.s32.totalorder %s29, 1
      %p183 = por %p181, %p182
      %p184 = scmp.ne.s32.totalorder %s175, %s176
      %p185 = scmp.eq.s32.totalorder %s29, 0
      %p186 = por %p184, %p185
      %p187 = scmp.ne.s32.totalorder %s175, %s176
      %p188 = scmp.eq.s32.totalorder %s30, 1
      %p189 = por %p187, %p188
      %p191 = scmp.ne.s32.totalorder %s176, %s190
      %p192 = scmp.eq.s32.totalorder %s30, 0
      %p193 = por %p191, %p192
      %s195 = sadd.s32 %s194, 1
      %p198 = scmp.eq.s32.totalorder %s24, 1
      %p199 = scmp.ne.s32.totalorder %s194, %s196
      %p200 = scmp.eq.s32.totalorder %s24, 0
      %p201 = por %p199, %p200
      %p202 = scmp.ne.s32.totalorder %s194, %s196
      %p203 = scmp.eq.s32.totalorder %s29, 1
      %p204 = por %p202, %p203
      %p205 = scmp.ne.s32.totalorder %s196, %s197
      %p206 = scmp.eq.s32.totalorder %s29, 0
      %p207 = por %p205, %p206
      %p208 = scmp.ne.s32.totalorder %s196, %s197
      %p209 = scmp.eq.s32.totalorder %s30, 1
      %p210 = por %p208, %p209
      %p212 = scmp.ne.s32.totalorder %s197, %s211
      %p213 = scmp.eq.s32.totalorder %s30, 0
      %p214 = por %p212, %p213
      %s215 = ssub.s32 %s24, %s31
      %p216 = scmp.eq.s32.totalorder %s215, 0
      %s218 = sadd.s32 %s217, 1
      %s219 = scalar_select %p216, %s217, %s218
      %p222 = pneg %p216
      %p223 = scmp.eq.s32.totalorder %s24, 1
      %p224 = por %p222, %p223
      %p225 = scmp.ne.s32.totalorder %s217, %s220
      %p226 = scmp.eq.s32.totalorder %s24, 0
      %p227 = por %p225, %p226
      %p228 = scmp.ne.s32.totalorder %s217, %s220
      %p229 = scmp.eq.s32.totalorder %s29, 1
      %p230 = por %p228, %p229
      %p231 = scmp.ne.s32.totalorder %s220, %s221
      %p232 = scmp.eq.s32.totalorder %s29, 0
      %p233 = por %p231, %p232
      %p234 = scmp.ne.s32.totalorder %s220, %s221
      %p235 = scmp.eq.s32.totalorder %s30, 1
      %p236 = por %p234, %p235
      %p238 = scmp.ne.s32.totalorder %s221, %s237
      %p239 = scmp.eq.s32.totalorder %s30, 0
      %p240 = por %p238, %p239
      %p241 = scmp.le.s32.totalorder 1, %s24
      %p242 = scmp.lt.s32.totalorder %s24, 3
      %p243 = pnand %p241, %p242
      %p244 = pneg %p243
      // Predicated region
      $region9: #{tpu_custom_call.1} parent=5 // pred_check
        _
      $region10: #{tpu_custom_call.1} parent=5 // pred_check_branch
        %246 = sbr.rel (%p243) target = $region12
      $region11: #{tpu_custom_call.1} parent=5 // pred_region
        %s247 = ssub.s32 %s24, 1
        // Predicated region
        $region13: #{tpu_custom_call.1} parent=11 // pred_check
          %p248 = pneg %p123
        $region14: #{tpu_custom_call.1} parent=11 // pred_check_branch
          %250 = sbr.rel (%p248) target = $region16
        $region15: #{tpu_custom_call.1} parent=11 // pred_region
          _
        $region16: #{tpu_custom_call.1} parent=11 // pred_fallthru
          _
        // Predicated region
        $region17: #{tpu_custom_call.1} parent=11 // pred_check
          %p251 = pneg %p144
        $region18: #{tpu_custom_call.1} parent=11 // pred_check_branch
          %253 = sbr.rel (%p251) target = $region20
        $region19: #{tpu_custom_call.1} parent=11 // pred_region
          %s255 = ssub.s32 1024, 1024
          %256 = vsyncadd [#allocation9], %s255
          %s257 = sshll.u32 [#allocation8], 4
          %s258 = int_to_ptr.vmem [resolvable:$true] %s257
          %263 = dma.hbm_to_vmem [thread:$0]  %s4, 1024, %s258, [#allocation9], 64, 64, 4
        $region20: #{tpu_custom_call.1} parent=11 // pred_fallthru
          _
        // Predicated region
        $region21: #{tpu_custom_call.1} parent=11 // pred_check
          %p264 = pneg %p165
        $region22: #{tpu_custom_call.1} parent=11 // pred_check_branch
          %266 = sbr.rel (%p264) target = $region24
        $region23: #{tpu_custom_call.1} parent=11 // pred_region
          _
        $region24: #{tpu_custom_call.1} parent=11 // pred_fallthru
          _
        // Predicated region
        $region25: #{tpu_custom_call.1} parent=11 // pred_check
          %p267 = pneg %p186
        $region26: #{tpu_custom_call.1} parent=11 // pred_check_branch
          %269 = sbr.rel (%p267) target = $region28
        $region27: #{tpu_custom_call.1} parent=11 // pred_region
          %s271 = ssub.s32 1024, 1024
          %272 = vsyncadd [#allocation9], %s271
          %s273 = sshll.u32 [#allocation10], 4
          %s274 = int_to_ptr.vmem [resolvable:$true] %s273
          %279 = dma.hbm_to_vmem [thread:$0]  %s6, 1024, %s274, [#allocation9], 64, 64, 4
        $region28: #{tpu_custom_call.1} parent=11 // pred_fallthru
          _
        // Predicated region
        $region29: #{tpu_custom_call.1} parent=11 // pred_check
          %p280 = pneg %p207
        $region30: #{tpu_custom_call.1} parent=11 // pred_check_branch
          %282 = sbr.rel (%p280) target = $region32
        $region31: #{tpu_custom_call.1} parent=11 // pred_region
          _
        $region32: #{tpu_custom_call.1} parent=11 // pred_fallthru
          _
      $region12: #{tpu_custom_call.1} parent=5 // pred_fallthru
        _
      %p283 = scmp.lt.s32.totalorder %s24, 2
      // Predicated region
      $region33: #{tpu_custom_call.1} parent=5 // pred_check
        %p284 = pneg %p283
      $region34: #{tpu_custom_call.1} parent=5 // pred_check_branch
        %286 = sbr.rel (%p284) target = $region36
      $region35: #{tpu_custom_call.1} parent=5 // pred_region
        // Predicated region
        $region37: #{tpu_custom_call.1} parent=35 // pred_check
          %p287 = pneg %p44
        $region38: #{tpu_custom_call.1} parent=35 // pred_check_branch
          %289 = sbr.rel (%p287) target = $region40
        $region39: #{tpu_custom_call.1} parent=35 // pred_region
          %s290 = sand.u32 %s34, 1
          %s291 = scalar_lea.sflag [#allocation3], %s290
          %s292 = sand.u32 %s34, 1
          %s293 = smul.addr %s292, 256
          %s294 = scalar_lea.vmem [#allocation2], %s293
          %s296 = ssub.s32 4096, 4096
          %297 = vsyncadd %s291, %s296
          %s298 = smul.addr %s24, 64
          %s299 = smul.addr %s298, 64
          %s300 = scalar_lea.hbm %s0, %s299
          %s301 = sshll.u32 %s294, 4
          %s302 = int_to_ptr.vmem [resolvable:$true] %s301
          %307 = dma.hbm_to_vmem [thread:$0]  %s300, 4096, %s302, %s291, 128, 128, 8
        $region40: #{tpu_custom_call.1} parent=35 // pred_fallthru
          _
        // Predicated region
        $region41: #{tpu_custom_call.1} parent=35 // pred_check
          %p308 = pneg %p70
        $region42: #{tpu_custom_call.1} parent=35 // pred_check_branch
          %310 = sbr.rel (%p308) target = $region44
        $region43: #{tpu_custom_call.1} parent=35 // pred_region
          %s311 = sand.u32 %s24, 1
          %s312 = scalar_lea.sflag [#allocation6], %s311
          %s313 = sand.u32 %s60, 1
          %s314 = smul.addr %s313, 128
          %s315 = scalar_lea.vmem [#allocation5], %s314
          %s317 = ssub.s32 2048, 2048
          %318 = vsyncadd %s312, %s317
          %s319 = smul.addr %s24, 32
          %s320 = smul.addr %s319, 64
          %s321 = scalar_lea.hbm %s1, %s320
          %s322 = sshll.u32 %s315, 4
          %s323 = int_to_ptr.vmem [resolvable:$true] %s322
          %328 = dma.hbm_to_vmem [thread:$0]  %s321, 2048, %s323, %s312, 64, 64, 4
        $region44: #{tpu_custom_call.1} parent=35 // pred_fallthru
          _
        // Predicated region
        $region45: #{tpu_custom_call.1} parent=35 // pred_check
          %p329 = pneg %p96
        $region46: #{tpu_custom_call.1} parent=35 // pred_check_branch
          %331 = sbr.rel (%p329) target = $region48
        $region47: #{tpu_custom_call.1} parent=35 // pred_region
          %s332 = sand.u32 %s24, 1
          %s333 = scalar_lea.sflag [#allocation6], %s332
          %s334 = sand.u32 %s86, 1
          %s335 = smul.addr %s334, 8
          %s336 = scalar_lea.vmem [#allocation7], %s335
          %s338 = ssub.s32 128, 128
          %339 = vsyncadd %s333, %s338
          %s340 = smul.addr %s24, 2
          %s341 = smul.addr %s340, 64
          %s342 = scalar_lea.hbm %s2, %s341
          %s344 = sshll.u32 %s336, 4
          %s345 = int_to_ptr.vmem [resolvable:$true] %s344
          %347 = dma.hbm_to_vmem [thread:$0]  %s342, 128, %s345, %s333
        $region48: #{tpu_custom_call.1} parent=35 // pred_fallthru
          _
      $region36: #{tpu_custom_call.1} parent=5 // pred_fallthru
        _
      %p348 = scmp.le.s32.totalorder 1, %s24
      %p349 = scmp.lt.s32.totalorder %s24, 3
      %p350 = pnand %p348, %p349
      %p351 = pneg %p350
      // Predicated region
      $region49: #{tpu_custom_call.1} parent=5 // pred_check
        _
      $region50: #{tpu_custom_call.1} parent=5 // pred_check_branch
        %353 = sbr.rel (%p350) target = $region52
      $region51: #{tpu_custom_call.1} parent=5 // pred_region
        %s354 = ssub.s32 %s24, 1
        %s355 = sand.u32 %s37, 1
        %s356 = scalar_lea.sflag [#allocation3], %s355
        %s357 = sand.u32 %s37, 1
        %s358 = smul.addr %s357, 256
        %s359 = scalar_lea.vmem [#allocation2], %s358
        // Predicated region
        $region53: #{tpu_custom_call.1} parent=51 // pred_check
          %p360 = pneg %p50
        $region54: #{tpu_custom_call.1} parent=51 // pred_check_branch
          %362 = sbr.rel (%p360) target = $region56
        $region55: #{tpu_custom_call.1} parent=51 // pred_region
          %363 = dma.done %s356, 4096
        $region56: #{tpu_custom_call.1} parent=51 // pred_fallthru
          _
        %s364 = sand.u32 %s29, 1
        %s365 = scalar_lea.sflag [#allocation6], %s364
        %s366 = sand.u32 %s63, 1
        %s367 = smul.addr %s366, 128
        %s368 = scalar_lea.vmem [#allocation5], %s367
        // Predicated region
        $region57: #{tpu_custom_call.1} parent=51 // pred_check
          %p369 = pneg %p76
        $region58: #{tpu_custom_call.1} parent=51 // pred_check_branch
          %371 = sbr.rel (%p369) target = $region60
        $region59: #{tpu_custom_call.1} parent=51 // pred_region
          %372 = dma.done %s365, 2048
        $region60: #{tpu_custom_call.1} parent=51 // pred_fallthru
          _
        %s373 = sand.u32 %s29, 1
        %s374 = scalar_lea.sflag [#allocation6], %s373
        %s375 = sand.u32 %s89, 1
        %s376 = smul.addr %s375, 8
        %s377 = scalar_lea.vmem [#allocation7], %s376
        // Predicated region
        $region61: #{tpu_custom_call.1} parent=51 // pred_check
          %p378 = pneg %p102
        $region62: #{tpu_custom_call.1} parent=51 // pred_check_branch
          %380 = sbr.rel (%p378) target = $region64
        $region63: #{tpu_custom_call.1} parent=51 // pred_region
          %381 = dma.done %s374, 128
        $region64: #{tpu_custom_call.1} parent=51 // pred_fallthru
          _
        // Predicated region
        $region65: #{tpu_custom_call.1} parent=51 // pred_check
          %p382 = pneg %p144
        $region66: #{tpu_custom_call.1} parent=51 // pred_check_branch
          %384 = sbr.rel (%p382) target = $region68
        $region67: #{tpu_custom_call.1} parent=51 // pred_region
          %385 = dma.done [#allocation9], 1024
        $region68: #{tpu_custom_call.1} parent=51 // pred_fallthru
          _
        // Predicated region
        $region69: #{tpu_custom_call.1} parent=51 // pred_check
          %p386 = pneg %p186
        $region70: #{tpu_custom_call.1} parent=51 // pred_check_branch
          %388 = sbr.rel (%p386) target = $region72
        $region71: #{tpu_custom_call.1} parent=51 // pred_region
          %389 = dma.done [#allocation9], 1024
        $region72: #{tpu_custom_call.1} parent=51 // pred_fallthru
          _
        %s390 = sand.u32 %s37, 1
        %s391 = scalar_lea.sflag [#allocation3], %s390
        %s392 = sand.u32 %s37, 1
        %s393 = smul.addr %s392, 256
        %s394 = scalar_lea.vmem [#allocation2], %s393
        %p395 = pneg %p50
        %p396 = pneg %p47
        %s397 = sand.u32 %s29, 1
        %s398 = scalar_lea.sflag [#allocation6], %s397
        %s399 = sand.u32 %s63, 1
        %s400 = smul.addr %s399, 128
        %s401 = scalar_lea.vmem [#allocation5], %s400
        %p402 = pneg %p76
        %p403 = pneg %p73
        %s404 = sand.u32 %s29, 1
        %s405 = scalar_lea.sflag [#allocation6], %s404
        %s406 = sand.u32 %s89, 1
        %s407 = smul.addr %s406, 8
        %s408 = scalar_lea.vmem [#allocation7], %s407
        %p409 = pneg %p102
        %p410 = pneg %p99
        %p411 = pneg %p123
        %p412 = pneg %p120
        %p413 = pneg %p144
        %p414 = pneg %p141
        %p415 = pneg %p165
        %p416 = pneg %p162
        %p417 = pneg %p186
        %p418 = pneg %p183
        %p419 = pneg %p207
        %p420 = pneg %p204
        %p421 = pneg %p233
        %p422 = pneg %p230
        %s423 = sand.u32 %s220, 1
        %s424 = scalar_lea.sflag [#allocation4], %s423
        %s425 = sand.u32 %s220, 1
        %s426 = smul.addr %s425, 8
        %s427 = scalar_lea.vmem [#allocation11], %s426
        %v429 = vld [vmem:[%s359] sm:$0xff]
        %v430 = vld [vmem:[%s359 + $0x8] sm:$0xff]
        %v431 = vld [vmem:[%s359 + $0x10] sm:$0xff]
        %v432 = vld [vmem:[%s359 + $0x18] sm:$0xff]
        %v433 = vld [vmem:[%s359 + $0x20] sm:$0xff]
        %v434 = vld [vmem:[%s359 + $0x28] sm:$0xff]
        %v435 = vld [vmem:[%s359 + $0x30] sm:$0xff]
        %v436 = vld [vmem:[%s359 + $0x38] sm:$0xff]
        %v437 = vld [vmem:[%s359 + $0x40] sm:$0xff]
        %v438 = vld [vmem:[%s359 + $0x48] sm:$0xff]
        %v439 = vld [vmem:[%s359 + $0x50] sm:$0xff]
        %v440 = vld [vmem:[%s359 + $0x58] sm:$0xff]
        %v441 = vld [vmem:[%s359 + $0x60] sm:$0xff]
        %v442 = vld [vmem:[%s359 + $0x68] sm:$0xff]
        %v443 = vld [vmem:[%s359 + $0x70] sm:$0xff]
        %v444 = vld [vmem:[%s359 + $0x78] sm:$0xff]
        %v445 = vld [vmem:[%s359 + $0x80] sm:$0xff]
        %v446 = vld [vmem:[%s359 + $0x88] sm:$0xff]
        %v447 = vld [vmem:[%s359 + $0x90] sm:$0xff]
        %v448 = vld [vmem:[%s359 + $0x98] sm:$0xff]
        %v449 = vld [vmem:[%s359 + $0xa0] sm:$0xff]
        %v450 = vld [vmem:[%s359 + $0xa8] sm:$0xff]
        %v451 = vld [vmem:[%s359 + $0xb0] sm:$0xff]
        %v452 = vld [vmem:[%s359 + $0xb8] sm:$0xff]
        %v453 = vld [vmem:[%s359 + $0xc0] sm:$0xff]
        %v454 = vld [vmem:[%s359 + $0xc8] sm:$0xff]
        %v455 = vld [vmem:[%s359 + $0xd0] sm:$0xff]
        %v456 = vld [vmem:[%s359 + $0xd8] sm:$0xff]
        %v457 = vld [vmem:[%s359 + $0xe0] sm:$0xff]
        %v458 = vld [vmem:[%s359 + $0xe8] sm:$0xff]
        %v459 = vld [vmem:[%s359 + $0xf0] sm:$0xff]
        %v460 = vld [vmem:[%s359 + $0xf8] sm:$0xff]
        %v461 = vld [vmem:[%s368] sm:$0xf]
        %v462 = vld [vmem:[%s368 + $0x4] sm:$0xf]
        %v463 = vld [vmem:[%s368 + $0x8] sm:$0xf]
        %v464 = vld [vmem:[%s368 + $0xc] sm:$0xf]
        %v465 = vld [vmem:[%s368 + $0x10] sm:$0xf]
        %v466 = vld [vmem:[%s368 + $0x14] sm:$0xf]
        %v467 = vld [vmem:[%s368 + $0x18] sm:$0xf]
        %v468 = vld [vmem:[%s368 + $0x1c] sm:$0xf]
        %v469 = vld [vmem:[%s368 + $0x20] sm:$0xf]
        %v470 = vld [vmem:[%s368 + $0x24] sm:$0xf]
        %v471 = vld [vmem:[%s368 + $0x28] sm:$0xf]
        %v472 = vld [vmem:[%s368 + $0x2c] sm:$0xf]
        %v473 = vld [vmem:[%s368 + $0x30] sm:$0xf]
        %v474 = vld [vmem:[%s368 + $0x34] sm:$0xf]
        %v475 = vld [vmem:[%s368 + $0x38] sm:$0xf]
        %v476 = vld [vmem:[%s368 + $0x3c] sm:$0xf]
        %v477 = vld [vmem:[%s368 + $0x40] sm:$0xf]
        %v478 = vld [vmem:[%s368 + $0x44] sm:$0xf]
        %v479 = vld [vmem:[%s368 + $0x48] sm:$0xf]
        %v480 = vld [vmem:[%s368 + $0x4c] sm:$0xf]
        %v481 = vld [vmem:[%s368 + $0x50] sm:$0xf]
        %v482 = vld [vmem:[%s368 + $0x54] sm:$0xf]
        %v483 = vld [vmem:[%s368 + $0x58] sm:$0xf]
        %v484 = vld [vmem:[%s368 + $0x5c] sm:$0xf]
        %v485 = vld [vmem:[%s368 + $0x60] sm:$0xf]
        %v486 = vld [vmem:[%s368 + $0x64] sm:$0xf]
        %v487 = vld [vmem:[%s368 + $0x68] sm:$0xf]
        %v488 = vld [vmem:[%s368 + $0x6c] sm:$0xf]
        %v489 = vld [vmem:[%s368 + $0x70] sm:$0xf]
        %v490 = vld [vmem:[%s368 + $0x74] sm:$0xf]
        %v491 = vld [vmem:[%s368 + $0x78] sm:$0xf]
        %v492 = vld [vmem:[%s368 + $0x7c] sm:$0xf]
        %v493 = vld [vmem:[%s3] sm:$0x1]
        %v495 = vlaneseq
        %v496 = vshrl.u32 %v495, 7
        %v497 = vsub.s32 0, %v496
        %v498 = vrot.slane %v493, %v497
        %v532 = vunpack.c.l.b16 %v429
        %v533 = vunpack.c.h.b16 %v429
        %v534 = vunpack.c.l.b16 %v430
        %v535 = vunpack.c.h.b16 %v430
        %v536 = vunpack.c.l.b16 %v431
        %v537 = vunpack.c.h.b16 %v431
        %v538 = vunpack.c.l.b16 %v432
        %v539 = vunpack.c.h.b16 %v432
        %v540 = vunpack.c.l.b16 %v433
        %v541 = vunpack.c.h.b16 %v433
        %v542 = vunpack.c.l.b16 %v434
        %v543 = vunpack.c.h.b16 %v434
        %v544 = vunpack.c.l.b16 %v435
        %v545 = vunpack.c.h.b16 %v435
        %v546 = vunpack.c.l.b16 %v436
        %v547 = vunpack.c.h.b16 %v436
        %v548 = vunpack.c.l.b16 %v437
        %v549 = vunpack.c.h.b16 %v437
        %v550 = vunpack.c.l.b16 %v438
        %v551 = vunpack.c.h.b16 %v438
        %v552 = vunpack.c.l.b16 %v439
        %v553 = vunpack.c.h.b16 %v439
        %v554 = vunpack.c.l.b16 %v440
        %v555 = vunpack.c.h.b16 %v440
        %v556 = vunpack.c.l.b16 %v441
        %v557 = vunpack.c.h.b16 %v441
        %v558 = vunpack.c.l.b16 %v442
        %v559 = vunpack.c.h.b16 %v442
        %v560 = vunpack.c.l.b16 %v443
        %v561 = vunpack.c.h.b16 %v443
        %v562 = vunpack.c.l.b16 %v444
        %v563 = vunpack.c.h.b16 %v444
        %v564 = vunpack.c.l.b16 %v445
        %v565 = vunpack.c.h.b16 %v445
        %v566 = vunpack.c.l.b16 %v446
        %v567 = vunpack.c.h.b16 %v446
        %v568 = vunpack.c.l.b16 %v447
        %v569 = vunpack.c.h.b16 %v447
        %v570 = vunpack.c.l.b16 %v448
        %v571 = vunpack.c.h.b16 %v448
        %v572 = vunpack.c.l.b16 %v449
        %v573 = vunpack.c.h.b16 %v449
        %v574 = vunpack.c.l.b16 %v450
        %v575 = vunpack.c.h.b16 %v450
        %v576 = vunpack.c.l.b16 %v451
        %v577 = vunpack.c.h.b16 %v451
        %v578 = vunpack.c.l.b16 %v452
        %v579 = vunpack.c.h.b16 %v452
        %v580 = vunpack.c.l.b16 %v453
        %v581 = vunpack.c.h.b16 %v453
        %v582 = vunpack.c.l.b16 %v454
        %v583 = vunpack.c.h.b16 %v454
        %v584 = vunpack.c.l.b16 %v455
        %v585 = vunpack.c.h.b16 %v455
        %v586 = vunpack.c.l.b16 %v456
        %v587 = vunpack.c.h.b16 %v456
        %v588 = vunpack.c.l.b16 %v457
        %v589 = vunpack.c.h.b16 %v457
        %v590 = vunpack.c.l.b16 %v458
        %v591 = vunpack.c.h.b16 %v458
        %v592 = vunpack.c.l.b16 %v459
        %v593 = vunpack.c.h.b16 %v459
        %v594 = vunpack.c.l.b16 %v460
        %v595 = vunpack.c.h.b16 %v460
        %v596 = vpack.c.b16 %v534, %v532
        %v597 = vpack.c.b16 %v535, %v533
        %v598 = vpack.c.b16 %v538, %v536
        %v599 = vpack.c.b16 %v539, %v537
        %v600 = vpack.c.b16 %v542, %v540
        %v601 = vpack.c.b16 %v543, %v541
        %v602 = vpack.c.b16 %v546, %v544
        %v603 = vpack.c.b16 %v547, %v545
        %v604 = vpack.c.b16 %v550, %v548
        %v605 = vpack.c.b16 %v551, %v549
        %v606 = vpack.c.b16 %v554, %v552
        %v607 = vpack.c.b16 %v555, %v553
        %v608 = vpack.c.b16 %v558, %v556
        %v609 = vpack.c.b16 %v559, %v557
        %v610 = vpack.c.b16 %v562, %v560
        %v611 = vpack.c.b16 %v563, %v561
        %v612 = vpack.c.b16 %v566, %v564
        %v613 = vpack.c.b16 %v567, %v565
        %v614 = vpack.c.b16 %v570, %v568
        %v615 = vpack.c.b16 %v571, %v569
        %v616 = vpack.c.b16 %v574, %v572
        %v617 = vpack.c.b16 %v575, %v573
        %v618 = vpack.c.b16 %v578, %v576
        %v619 = vpack.c.b16 %v579, %v577
        %v620 = vpack.c.b16 %v582, %v580
        %v621 = vpack.c.b16 %v583, %v581
        %v622 = vpack.c.b16 %v586, %v584
        %v623 = vpack.c.b16 %v587, %v585
        %v624 = vpack.c.b16 %v590, %v588
        %v625 = vpack.c.b16 %v591, %v589
        %v626 = vpack.c.b16 %v594, %v592
        %v627 = vpack.c.b16 %v595, %v593
        %v692 = vunpack.c.l.b16 %v461
        %v693 = vunpack.c.l.b16 %v462
        %v694 = vunpack.c.l.b16 %v463
        %v695 = vunpack.c.l.b16 %v464
        %v696 = vunpack.c.l.b16 %v465
        %v697 = vunpack.c.l.b16 %v466
        %v698 = vunpack.c.l.b16 %v467
        %v699 = vunpack.c.l.b16 %v468
        %v700 = vunpack.c.l.b16 %v469
        %v701 = vunpack.c.l.b16 %v470
        %v702 = vunpack.c.l.b16 %v471
        %v703 = vunpack.c.l.b16 %v472
        %v704 = vunpack.c.l.b16 %v473
        %v705 = vunpack.c.l.b16 %v474
        %v706 = vunpack.c.l.b16 %v475
        %v707 = vunpack.c.l.b16 %v476
        %v708 = vunpack.c.l.b16 %v477
        %v709 = vunpack.c.l.b16 %v478
        %v710 = vunpack.c.l.b16 %v479
        %v711 = vunpack.c.l.b16 %v480
        %v712 = vunpack.c.l.b16 %v481
        %v713 = vunpack.c.l.b16 %v482
        %v714 = vunpack.c.l.b16 %v483
        %v715 = vunpack.c.l.b16 %v484
        %v716 = vunpack.c.l.b16 %v485
        %v717 = vunpack.c.l.b16 %v486
        %v718 = vunpack.c.l.b16 %v487
        %v719 = vunpack.c.l.b16 %v488
        %v720 = vunpack.c.l.b16 %v489
        %v721 = vunpack.c.l.b16 %v490
        %v722 = vunpack.c.l.b16 %v491
        %v723 = vunpack.c.l.b16 %v492
        %v724 = vpack.c.b16 %v693, %v692
        %v725 = vpack.c.b16 %v695, %v694
        %v726 = vpack.c.b16 %v697, %v696
        %v727 = vpack.c.b16 %v699, %v698
        %v728 = vpack.c.b16 %v701, %v700
        %v729 = vpack.c.b16 %v703, %v702
        %v730 = vpack.c.b16 %v705, %v704
        %v731 = vpack.c.b16 %v707, %v706
        %v732 = vpack.c.b16 %v709, %v708
        %v733 = vpack.c.b16 %v711, %v710
        %v734 = vpack.c.b16 %v713, %v712
        %v735 = vpack.c.b16 %v715, %v714
        %v736 = vpack.c.b16 %v717, %v716
        %v737 = vpack.c.b16 %v719, %v718
        %v738 = vpack.c.b16 %v721, %v720
        %v739 = vpack.c.b16 %v723, %v722
        %756 = vmatprep.subr.bf16.mxu0 0
        %757 = vmatpush1.bf16.msra.mxu0 %v724
        %758 = vmatprep.subr.bf16.mxu0 0
        %759 = vmatpush1.bf16.msra.mxu0 %v725
        %760 = vmatprep.subr.bf16.mxu0 0
        %761 = vmatpush1.bf16.msra.mxu0 %v726
        %762 = vmatprep.subr.bf16.mxu0 0
        %763 = vmatpush1.bf16.msra.mxu0 %v727
        %764 = vmatprep.subr.bf16.mxu0 0
        %765 = vmatpush1.bf16.msra.mxu0 %v728
        %766 = vmatprep.subr.bf16.mxu0 0
        %767 = vmatpush1.bf16.msra.mxu0 %v729
        %768 = vmatprep.subr.bf16.mxu0 0
        %769 = vmatpush1.bf16.msra.mxu0 %v730
        %770 = vmatprep.subr.bf16.mxu0 0
        %771 = vmatpush1.bf16.msra.mxu0 %v731
        %772 = vmatprep.subr.bf16.mxu0 0
        %773 = vmatpush1.bf16.msra.mxu0 %v732
        %774 = vmatprep.subr.bf16.mxu0 0
        %775 = vmatpush1.bf16.msra.mxu0 %v733
        %776 = vmatprep.subr.bf16.mxu0 0
        %777 = vmatpush1.bf16.msra.mxu0 %v734
        %778 = vmatprep.subr.bf16.mxu0 0
        %779 = vmatpush1.bf16.msra.mxu0 %v735
        %780 = vmatprep.subr.bf16.mxu0 0
        %781 = vmatpush1.bf16.msra.mxu0 %v736
        %782 = vmatprep.subr.bf16.mxu0 0
        %783 = vmatpush1.bf16.msra.mxu0 %v737
        %784 = vmatprep.subr.bf16.mxu0 0
        %785 = vmatpush1.bf16.msra.mxu0 %v738
        %786 = vmatprep.subr.bf16.mxu0 0
        %787 = vmatpush1.bf16.msra.mxu0 %v739
        %788 = vmatprep.mubr.bf16.mxu0 %v597
        %789 = vmatmul.mubr.bf16.gmra.mrb[0].mxu0 %v596
        %v790 = vpop.f32.mrb[0].mxu0
        %v791 = vadd.f32 %v498, %v790
        %v792 = vpop.f32.mrb[0].mxu0
        %v793 = vpop.f32.mrb[0].mxu0
        %v794 = vadd.f32 %v498, %v793
        %v795 = vpop.f32.mrb[0].mxu0
        %796 = vmatprep.mubr.bf16.mxu0 %v599
        %797 = vmatmul.mubr.bf16.gmra.mrb[0].mxu0 %v598
        %v798 = vpop.f32.mrb[0].mxu0
        %v799 = vadd.f32 %v498, %v798
        %v800 = vpop.f32.mrb[0].mxu0
        %v801 = vpop.f32.mrb[0].mxu0
        %v802 = vadd.f32 %v498, %v801
        %v803 = vpop.f32.mrb[0].mxu0
        %804 = vmatprep.mubr.bf16.mxu0 %v601
        %805 = vmatmul.mubr.bf16.gmra.mrb[0].mxu0 %v600
        %v806 = vpop.f32.mrb[0].mxu0
        %v807 = vadd.f32 %v498, %v806
        %v808 = vpop.f32.mrb[0].mxu0
        %v809 = vpop.f32.mrb[0].mxu0
        %v810 = vadd.f32 %v498, %v809
        %v811 = vpop.f32.mrb[0].mxu0
        %812 = vmatprep.mubr.bf16.mxu0 %v603
        %813 = vmatmul.mubr.bf16.gmra.mrb[0].mxu0 %v602
        %v814 = vpop.f32.mrb[0].mxu0
        %v815 = vadd.f32 %v498, %v814
        %v816 = vpop.f32.mrb[0].mxu0
        %v817 = vpop.f32.mrb[0].mxu0
        %v818 = vadd.f32 %v498, %v817
        %v819 = vpop.f32.mrb[0].mxu0
        %820 = vmatprep.mubr.bf16.mxu0 %v605
        %821 = vmatmul.mubr.bf16.gmra.mrb[0].mxu0 %v604
        %v822 = vpop.f32.mrb[0].mxu0
        %v823 = vadd.f32 %v498, %v822
        %v824 = vpop.f32.mrb[0].mxu0
        %v825 = vpop.f32.mrb[0].mxu0
        %v826 = vadd.f32 %v498, %v825
        %v827 = vpop.f32.mrb[0].mxu0
        %828 = vmatprep.mubr.bf16.mxu0 %v607
        %829 = vmatmul.mubr.bf16.gmra.mrb[0].mxu0 %v606
        %v830 = vpop.f32.mrb[0].mxu0
        %v831 = vadd.f32 %v498, %v830
        %v832 = vpop.f32.mrb[0].mxu0
        %v833 = vpop.f32.mrb[0].mxu0
        %v834 = vadd.f32 %v498, %v833
        %v835 = vpop.f32.mrb[0].mxu0
        %836 = vmatprep.mubr.bf16.mxu0 %v609
        %837 = vmatmul.mubr.bf16.gmra.mrb[0].mxu0 %v608
        %v838 = vpop.f32.mrb[0].mxu0
        %v839 = vadd.f32 %v498, %v838
        %v840 = vpop.f32.mrb[0].mxu0
        %v841 = vpop.f32.mrb[0].mxu0
        %v842 = vadd.f32 %v498, %v841
        %v843 = vpop.f32.mrb[0].mxu0
        %844 = vmatprep.mubr.bf16.mxu0 %v611
        %845 = vmatmul.mubr.bf16.gmra.mrb[0].mxu0 %v610
        %v846 = vpop.f32.mrb[0].mxu0
        %v847 = vadd.f32 %v498, %v846
        %v848 = vpop.f32.mrb[0].mxu0
        %v849 = vpop.f32.mrb[0].mxu0
        %v850 = vadd.f32 %v498, %v849
        %v851 = vpop.f32.mrb[0].mxu0
        %852 = vmatprep.mubr.bf16.mxu0 %v613
        %853 = vmatmul.mubr.bf16.gmra.mrb[0].mxu0 %v612
        %v854 = vpop.f32.mrb[0].mxu0
        %v855 = vadd.f32 %v498, %v854
        %v856 = vpop.f32.mrb[0].mxu0
        %v857 = vpop.f32.mrb[0].mxu0
        %v858 = vadd.f32 %v498, %v857
        %v859 = vpop.f32.mrb[0].mxu0
        %860 = vmatprep.mubr.bf16.mxu0 %v615
        %861 = vmatmul.mubr.bf16.gmra.mrb[0].mxu0 %v614
        %v862 = vpop.f32.mrb[0].mxu0
        %v863 = vadd.f32 %v498, %v862
        %v864 = vpop.f32.mrb[0].mxu0
        %v865 = vpop.f32.mrb[0].mxu0
        %v866 = vadd.f32 %v498, %v865
        %v867 = vpop.f32.mrb[0].mxu0
        %868 = vmatprep.mubr.bf16.mxu0 %v617
        %869 = vmatmul.mubr.bf16.gmra.mrb[0].mxu0 %v616
        %v870 = vpop.f32.mrb[0].mxu0
        %v871 = vadd.f32 %v498, %v870
        %v872 = vpop.f32.mrb[0].mxu0
        %v873 = vpop.f32.mrb[0].mxu0
        %v874 = vadd.f32 %v498, %v873
        %v875 = vpop.f32.mrb[0].mxu0
        %876 = vmatprep.mubr.bf16.mxu0 %v619
        %877 = vmatmul.mubr.bf16.gmra.mrb[0].mxu0 %v618
        %v878 = vpop.f32.mrb[0].mxu0
        %v879 = vadd.f32 %v498, %v878
        %v880 = vpop.f32.mrb[0].mxu0
        %v881 = vpop.f32.mrb[0].mxu0
        %v882 = vadd.f32 %v498, %v881
        %v883 = vpop.f32.mrb[0].mxu0
        %884 = vmatprep.mubr.bf16.mxu0 %v621
        %885 = vmatmul.mubr.bf16.gmra.mrb[0].mxu0 %v620
        %v886 = vpop.f32.mrb[0].mxu0
        %v887 = vadd.f32 %v498, %v886
        %v888 = vpop.f32.mrb[0].mxu0
        %v889 = vpop.f32.mrb[0].mxu0
        %v890 = vadd.f32 %v498, %v889
        %v891 = vpop.f32.mrb[0].mxu0
        %892 = vmatprep.mubr.bf16.mxu0 %v623
        %893 = vmatmul.mubr.bf16.gmra.mrb[0].mxu0 %v622
        %v894 = vpop.f32.mrb[0].mxu0
        %v895 = vadd.f32 %v498, %v894
        %v896 = vpop.f32.mrb[0].mxu0
        %v897 = vpop.f32.mrb[0].mxu0
        %v898 = vadd.f32 %v498, %v897
        %v899 = vpop.f32.mrb[0].mxu0
        %900 = vmatprep.mubr.bf16.mxu0 %v625
        %901 = vmatmul.mubr.bf16.gmra.mrb[0].mxu0 %v624
        %v902 = vpop.f32.mrb[0].mxu0
        %v903 = vadd.f32 %v498, %v902
        %v904 = vpop.f32.mrb[0].mxu0
        %v905 = vpop.f32.mrb[0].mxu0
        %v906 = vadd.f32 %v498, %v905
        %v907 = vpop.f32.mrb[0].mxu0
        %908 = vmatprep.mubr.bf16.mxu0 %v627
        %909 = vmatmul.mubr.bf16.gmra.mrb[0].mxu0 %v626
        %v910 = vpop.f32.mrb[0].mxu0
        %v911 = vadd.f32 %v498, %v910
        %v912 = vpop.f32.mrb[0].mxu0
        %v913 = vpop.f32.mrb[0].mxu0
        %v914 = vadd.f32 %v498, %v913
        %v915 = vpop.f32.mrb[0].mxu0
        %916 = vdwg.mxu0
        %v917 = vmax.f32 %v791, 0.0
        %v918 = vmax.f32 %v794, 0.0
        %v919 = vmax.f32 %v799, 0.0
        %v920 = vmax.f32 %v802, 0.0
        %v921 = vmax.f32 %v807, 0.0
        %v922 = vmax.f32 %v810, 0.0
        %v923 = vmax.f32 %v815, 0.0
        %v924 = vmax.f32 %v818, 0.0
        %v925 = vmax.f32 %v823, 0.0
        %v926 = vmax.f32 %v826, 0.0
        %v927 = vmax.f32 %v831, 0.0
        %v928 = vmax.f32 %v834, 0.0
        %v929 = vmax.f32 %v839, 0.0
        %v930 = vmax.f32 %v842, 0.0
        %v931 = vmax.f32 %v847, 0.0
        %v932 = vmax.f32 %v850, 0.0
        %v933 = vmax.f32 %v855, 0.0
        %v934 = vmax.f32 %v858, 0.0
        %v935 = vmax.f32 %v863, 0.0
        %v936 = vmax.f32 %v866, 0.0
        %v937 = vmax.f32 %v871, 0.0
        %v938 = vmax.f32 %v874, 0.0
        %v939 = vmax.f32 %v879, 0.0
        %v940 = vmax.f32 %v882, 0.0
        %v941 = vmax.f32 %v887, 0.0
        %v942 = vmax.f32 %v890, 0.0
        %v943 = vmax.f32 %v895, 0.0
        %v944 = vmax.f32 %v898, 0.0
        %v945 = vmax.f32 %v903, 0.0
        %v946 = vmax.f32 %v906, 0.0
        %v947 = vmax.f32 %v911, 0.0
        %v948 = vmax.f32 %v914, 0.0
        %v949 = vpack.c.bf16 %v918, %v917
        %v950 = vpack.c.bf16 %v920, %v919
        %v951 = vpack.c.bf16 %v922, %v921
        %v952 = vpack.c.bf16 %v924, %v923
        %v953 = vpack.c.bf16 %v926, %v925
        %v954 = vpack.c.bf16 %v928, %v927
        %v955 = vpack.c.bf16 %v930, %v929
        %v956 = vpack.c.bf16 %v932, %v931
        %v957 = vpack.c.bf16 %v934, %v933
        %v958 = vpack.c.bf16 %v936, %v935
        %v959 = vpack.c.bf16 %v938, %v937
        %v960 = vpack.c.bf16 %v940, %v939
        %v961 = vpack.c.bf16 %v942, %v941
        %v962 = vpack.c.bf16 %v944, %v943
        %v963 = vpack.c.bf16 %v946, %v945
        %v964 = vpack.c.bf16 %v948, %v947
        %v965 = vld [vmem:[#allocation8] sm:$0xf]
        %v966 = vld [vmem:[#allocation8 + $0x4] sm:$0xf]
        %v967 = vld [vmem:[#allocation8 + $0x8] sm:$0xf]
        %v968 = vld [vmem:[#allocation8 + $0xc] sm:$0xf]
        %v969 = vld [vmem:[#allocation8 + $0x10] sm:$0xf]
        %v970 = vld [vmem:[#allocation8 + $0x14] sm:$0xf]
        %v971 = vld [vmem:[#allocation8 + $0x18] sm:$0xf]
        %v972 = vld [vmem:[#allocation8 + $0x1c] sm:$0xf]
        %v973 = vld [vmem:[#allocation8 + $0x20] sm:$0xf]
        %v974 = vld [vmem:[#allocation8 + $0x24] sm:$0xf]
        %v975 = vld [vmem:[#allocation8 + $0x28] sm:$0xf]
        %v976 = vld [vmem:[#allocation8 + $0x2c] sm:$0xf]
        %v977 = vld [vmem:[#allocation8 + $0x30] sm:$0xf]
        %v978 = vld [vmem:[#allocation8 + $0x34] sm:$0xf]
        %v979 = vld [vmem:[#allocation8 + $0x38] sm:$0xf]
        %v980 = vld [vmem:[#allocation8 + $0x3c] sm:$0xf]
        %v997 = vunpack.c.l.b16 %v965
        %v998 = vunpack.c.l.b16 %v966
        %v999 = vunpack.c.l.b16 %v967
        %v1000 = vunpack.c.l.b16 %v968
        %v1001 = vunpack.c.l.b16 %v969
        %v1002 = vunpack.c.l.b16 %v970
        %v1003 = vunpack.c.l.b16 %v971
        %v1004 = vunpack.c.l.b16 %v972
        %v1005 = vunpack.c.l.b16 %v973
        %v1006 = vunpack.c.l.b16 %v974
        %v1007 = vunpack.c.l.b16 %v975
        %v1008 = vunpack.c.l.b16 %v976
        %v1009 = vunpack.c.l.b16 %v977
        %v1010 = vunpack.c.l.b16 %v978
        %v1011 = vunpack.c.l.b16 %v979
        %v1012 = vunpack.c.l.b16 %v980
        %v1013 = vpack.c.b16 %v998, %v997
        %v1014 = vpack.c.b16 %v1000, %v999
        %v1015 = vpack.c.b16 %v1002, %v1001
        %v1016 = vpack.c.b16 %v1004, %v1003
        %v1017 = vpack.c.b16 %v1006, %v1005
        %v1018 = vpack.c.b16 %v1008, %v1007
        %v1019 = vpack.c.b16 %v1010, %v1009
        %v1020 = vpack.c.b16 %v1012, %v1011
        %1029 = vmatprep.subr.bf16.mxu0 0
        %1030 = vmatpush1.bf16.msra.mxu0 %v1013
        %1031 = vmatprep.subr.bf16.mxu0 0
        %1032 = vmatpush1.bf16.msra.mxu0 %v1014
        %1033 = vmatprep.subr.bf16.mxu0 0
        %1034 = vmatpush1.bf16.msra.mxu0 %v1015
        %1035 = vmatprep.subr.bf16.mxu0 0
        %1036 = vmatpush1.bf16.msra.mxu0 %v1016
        %1037 = vmatprep.subr.bf16.mxu0 0
        %1038 = vmatpush1.bf16.msra.mxu0 %v1017
        %1039 = vmatprep.subr.bf16.mxu0 0
        %1040 = vmatpush1.bf16.msra.mxu0 %v1018
        %1041 = vmatprep.subr.bf16.mxu0 0
        %1042 = vmatpush1.bf16.msra.mxu0 %v1019
        %1043 = vmatprep.subr.bf16.mxu0 0
        %1044 = vmatpush1.bf16.msra.mxu0 %v1020
        %1045 = vmatprep.subr.bf16.mxu0 0
        %1046 = vmatpush1.bf16.msra.mxu0 0
        %1047 = vmatprep.subr.bf16.mxu0 0
        %1048 = vmatpush1.bf16.msra.mxu0 0
        %1049 = vmatprep.subr.bf16.mxu0 0
        %1050 = vmatpush1.bf16.msra.mxu0 0
        %1051 = vmatprep.subr.bf16.mxu0 0
        %1052 = vmatpush1.bf16.msra.mxu0 0
        %1053 = vmatprep.subr.bf16.mxu0 0
        %1054 = vmatpush1.bf16.msra.mxu0 0
        %1055 = vmatprep.subr.bf16.mxu0 0
        %1056 = vmatpush1.bf16.msra.mxu0 0
        %1057 = vmatprep.subr.bf16.mxu0 0
        %1058 = vmatpush1.bf16.msra.mxu0 0
        %1059 = vmatprep.subr.bf16.mxu0 0
        %1060 = vmatpush1.bf16.msra.mxu0 0
        %1061 = vmatprep.mubr.bf16.mxu0 0
        %1062 = vmatmul.mubr.bf16.gmra.mrb[0].mxu0 %v949
        %v1063 = vpop.f32.mrb[0].mxu0
        %v1064 = vadd.f32 0.0, %v1063
        %v1065 = vpop.f32.mrb[0].mxu0
        %v1066 = vpop.f32.mrb[0].mxu0
        %v1067 = vadd.f32 0.0, %v1066
        %v1068 = vpop.f32.mrb[0].mxu0
        %1069 = vmatprep.mubr.bf16.mxu0 0
        %1070 = vmatmul.mubr.bf16.gmra.mrb[0].mxu0 %v950
        %v1071 = vpop.f32.mrb[0].mxu0
        %v1072 = vadd.f32 0.0, %v1071
        %v1073 = vpop.f32.mrb[0].mxu0
        %v1074 = vpop.f32.mrb[0].mxu0
        %v1075 = vadd.f32 0.0, %v1074
        %v1076 = vpop.f32.mrb[0].mxu0
        %1077 = vmatprep.mubr.bf16.mxu0 0
        %1078 = vmatmul.mubr.bf16.gmra.mrb[0].mxu0 %v951
        %v1079 = vpop.f32.mrb[0].mxu0
        %v1080 = vadd.f32 0.0, %v1079
        %v1081 = vpop.f32.mrb[0].mxu0
        %v1082 = vpop.f32.mrb[0].mxu0
        %v1083 = vadd.f32 0.0, %v1082
        %v1084 = vpop.f32.mrb[0].mxu0
        %1085 = vmatprep.mubr.bf16.mxu0 0
        %1086 = vmatmul.mubr.bf16.gmra.mrb[0].mxu0 %v952
        %v1087 = vpop.f32.mrb[0].mxu0
        %v1088 = vadd.f32 0.0, %v1087
        %v1089 = vpop.f32.mrb[0].mxu0
        %v1090 = vpop.f32.mrb[0].mxu0
        %v1091 = vadd.f32 0.0, %v1090
        %v1092 = vpop.f32.mrb[0].mxu0
        %1093 = vmatprep.mubr.bf16.mxu0 0
        %1094 = vmatmul.mubr.bf16.gmra.mrb[0].mxu0 %v953
        %v1095 = vpop.f32.mrb[0].mxu0
        %v1096 = vadd.f32 0.0, %v1095
        %v1097 = vpop.f32.mrb[0].mxu0
        %v1098 = vpop.f32.mrb[0].mxu0
        %v1099 = vadd.f32 0.0, %v1098
        %v1100 = vpop.f32.mrb[0].mxu0
        %1101 = vmatprep.mubr.bf16.mxu0 0
        %1102 = vmatmul.mubr.bf16.gmra.mrb[0].mxu0 %v954
        %v1103 = vpop.f32.mrb[0].mxu0
        %v1104 = vadd.f32 0.0, %v1103
        %v1105 = vpop.f32.mrb[0].mxu0
        %v1106 = vpop.f32.mrb[0].mxu0
        %v1107 = vadd.f32 0.0, %v1106
        %v1108 = vpop.f32.mrb[0].mxu0
        %1109 = vmatprep.mubr.bf16.mxu0 0
        %1110 = vmatmul.mubr.bf16.gmra.mrb[0].mxu0 %v955
        %v1111 = vpop.f32.mrb[0].mxu0
        %v1112 = vadd.f32 0.0, %v1111
        %v1113 = vpop.f32.mrb[0].mxu0
        %v1114 = vpop.f32.mrb[0].mxu0
        %v1115 = vadd.f32 0.0, %v1114
        %v1116 = vpop.f32.mrb[0].mxu0
        %1117 = vmatprep.mubr.bf16.mxu0 0
        %1118 = vmatmul.mubr.bf16.gmra.mrb[0].mxu0 %v956
        %v1119 = vpop.f32.mrb[0].mxu0
        %v1120 = vadd.f32 0.0, %v1119
        %v1121 = vpop.f32.mrb[0].mxu0
        %v1122 = vpop.f32.mrb[0].mxu0
        %v1123 = vadd.f32 0.0, %v1122
        %v1124 = vpop.f32.mrb[0].mxu0
        %1125 = vmatprep.mubr.bf16.mxu0 0
        %1126 = vmatmul.mubr.bf16.gmra.mrb[0].mxu0 %v957
        %v1127 = vpop.f32.mrb[0].mxu0
        %v1128 = vadd.f32 0.0, %v1127
        %v1129 = vpop.f32.mrb[0].mxu0
        %v1130 = vpop.f32.mrb[0].mxu0
        %v1131 = vadd.f32 0.0, %v1130
        %v1132 = vpop.f32.mrb[0].mxu0
        %1133 = vmatprep.mubr.bf16.mxu0 0
        %1134 = vmatmul.mubr.bf16.gmra.mrb[0].mxu0 %v958
        %v1135 = vpop.f32.mrb[0].mxu0
        %v1136 = vadd.f32 0.0, %v1135
        %v1137 = vpop.f32.mrb[0].mxu0
        %v1138 = vpop.f32.mrb[0].mxu0
        %v1139 = vadd.f32 0.0, %v1138
        %v1140 = vpop.f32.mrb[0].mxu0
        %1141 = vmatprep.mubr.bf16.mxu0 0
        %1142 = vmatmul.mubr.bf16.gmra.mrb[0].mxu0 %v959
        %v1143 = vpop.f32.mrb[0].mxu0
        %v1144 = vadd.f32 0.0, %v1143
        %v1145 = vpop.f32.mrb[0].mxu0
        %v1146 = vpop.f32.mrb[0].mxu0
        %v1147 = vadd.f32 0.0, %v1146
        %v1148 = vpop.f32.mrb[0].mxu0
        %1149 = vmatprep.mubr.bf16.mxu0 0
        %1150 = vmatmul.mubr.bf16.gmra.mrb[0].mxu0 %v960
        %v1151 = vpop.f32.mrb[0].mxu0
        %v1152 = vadd.f32 0.0, %v1151
        %v1153 = vpop.f32.mrb[0].mxu0
        %v1154 = vpop.f32.mrb[0].mxu0
        %v1155 = vadd.f32 0.0, %v1154
        %v1156 = vpop.f32.mrb[0].mxu0
        %1157 = vmatprep.mubr.bf16.mxu0 0
        %1158 = vmatmul.mubr.bf16.gmra.mrb[0].mxu0 %v961
        %v1159 = vpop.f32.mrb[0].mxu0
        %v1160 = vadd.f32 0.0, %v1159
        %v1161 = vpop.f32.mrb[0].mxu0
        %v1162 = vpop.f32.mrb[0].mxu0
        %v1163 = vadd.f32 0.0, %v1162
        %v1164 = vpop.f32.mrb[0].mxu0
        %1165 = vmatprep.mubr.bf16.mxu0 0
        %1166 = vmatmul.mubr.bf16.gmra.mrb[0].mxu0 %v962
        %v1167 = vpop.f32.mrb[0].mxu0
        %v1168 = vadd.f32 0.0, %v1167
        %v1169 = vpop.f32.mrb[0].mxu0
        %v1170 = vpop.f32.mrb[0].mxu0
        %v1171 = vadd.f32 0.0, %v1170
        %v1172 = vpop.f32.mrb[0].mxu0
        %1173 = vmatprep.mubr.bf16.mxu0 0
        %1174 = vmatmul.mubr.bf16.gmra.mrb[0].mxu0 %v963
        %v1175 = vpop.f32.mrb[0].mxu0
        %v1176 = vadd.f32 0.0, %v1175
        %v1177 = vpop.f32.mrb[0].mxu0
        %v1178 = vpop.f32.mrb[0].mxu0
        %v1179 = vadd.f32 0.0, %v1178
        %v1180 = vpop.f32.mrb[0].mxu0
        %1181 = vmatprep.mubr.bf16.mxu0 0
        %1182 = vmatmul.mubr.bf16.gmra.mrb[0].mxu0 %v964
        %v1183 = vpop.f32.mrb[0].mxu0
        %v1184 = vadd.f32 0.0, %v1183
        %v1185 = vpop.f32.mrb[0].mxu0
        %v1186 = vpop.f32.mrb[0].mxu0
        %v1187 = vadd.f32 0.0, %v1186
        %v1188 = vpop.f32.mrb[0].mxu0
        %1189 = vdwg.mxu0
        %v1190 = vpack.c.bf16 %v1067, %v1064
        %v1191 = vpack.c.bf16 %v1075, %v1072
        %v1192 = vpack.c.bf16 %v1083, %v1080
        %v1193 = vpack.c.bf16 %v1091, %v1088
        %v1194 = vpack.c.bf16 %v1099, %v1096
        %v1195 = vpack.c.bf16 %v1107, %v1104
        %v1196 = vpack.c.bf16 %v1115, %v1112
        %v1197 = vpack.c.bf16 %v1123, %v1120
        %v1198 = vpack.c.bf16 %v1131, %v1128
        %v1199 = vpack.c.bf16 %v1139, %v1136
        %v1200 = vpack.c.bf16 %v1147, %v1144
        %v1201 = vpack.c.bf16 %v1155, %v1152
        %v1202 = vpack.c.bf16 %v1163, %v1160
        %v1203 = vpack.c.bf16 %v1171, %v1168
        %v1204 = vpack.c.bf16 %v1179, %v1176
        %v1205 = vpack.c.bf16 %v1187, %v1184
        %v1206 = vld [vmem:[%s5] sm:$0x1]
        %v1208 = vlaneseq
        %v1209 = vshrl.u32 %v1208, 7
        %v1210 = vsub.s32 0, %v1209
        %v1211 = vrot.slane %v1206, %v1210
        %1213 = vmatprep.subr.bf16.mxu0 0
        %1214 = vmatpush1.bf16.msra.mxu0 %v1190
        %1215 = vmatprep.subr.bf16.mxu0 0
        %1216 = vmatpush1.bf16.msra.mxu0 %v1191
        %1217 = vmatprep.subr.bf16.mxu0 0
        %1218 = vmatpush1.bf16.msra.mxu0 %v1192
        %1219 = vmatprep.subr.bf16.mxu0 0
        %1220 = vmatpush1.bf16.msra.mxu0 %v1193
        %1221 = vmatprep.subr.bf16.mxu0 0
        %1222 = vmatpush1.bf16.msra.mxu0 %v1194
        %1223 = vmatprep.subr.bf16.mxu0 0
        %1224 = vmatpush1.bf16.msra.mxu0 %v1195
        %1225 = vmatprep.subr.bf16.mxu0 0
        %1226 = vmatpush1.bf16.msra.mxu0 %v1196
        %1227 = vmatprep.subr.bf16.mxu0 0
        %1228 = vmatpush1.bf16.msra.mxu0 %v1197
        %1229 = vmatprep.subr.bf16.mxu0 0
        %1230 = vmatpush1.bf16.msra.mxu0 %v1198
        %1231 = vmatprep.subr.bf16.mxu0 0
        %1232 = vmatpush1.bf16.msra.mxu0 %v1199
        %1233 = vmatprep.subr.bf16.mxu0 0
        %1234 = vmatpush1.bf16.msra.mxu0 %v1200
        %1235 = vmatprep.subr.bf16.mxu0 0
        %1236 = vmatpush1.bf16.msra.mxu0 %v1201
        %1237 = vmatprep.subr.bf16.mxu0 0
        %1238 = vmatpush1.bf16.msra.mxu0 %v1202
        %1239 = vmatprep.subr.bf16.mxu0 0
        %1240 = vmatpush1.bf16.msra.mxu0 %v1203
        %1241 = vmatprep.subr.bf16.mxu0 0
        %1242 = vmatpush1.bf16.msra.mxu0 %v1204
        %1243 = vmatprep.subr.bf16.mxu0 0
        %1244 = vmatpush1.bf16.msra.mxu0 %v1205
        %1245 = vmatprep.mubr.bf16.mxu0 %v597
        %1246 = vmatmul.mubr.bf16.gmra.mrb[0].mxu0 %v596
        %v1247 = vpop.f32.mrb[0].mxu0
        %v1248 = vadd.f32 %v1211, %v1247
        %v1249 = vpop.f32.mrb[0].mxu0
        %v1250 = vpop.f32.mrb[0].mxu0
        %v1251 = vadd.f32 %v1211, %v1250
        %v1252 = vpop.f32.mrb[0].mxu0
        %1253 = vmatprep.mubr.bf16.mxu0 %v599
        %1254 = vmatmul.mubr.bf16.gmra.mrb[0].mxu0 %v598
        %v1255 = vpop.f32.mrb[0].mxu0
        %v1256 = vadd.f32 %v1211, %v1255
        %v1257 = vpop.f32.mrb[0].mxu0
        %v1258 = vpop.f32.mrb[0].mxu0
        %v1259 = vadd.f32 %v1211, %v1258
        %v1260 = vpop.f32.mrb[0].mxu0
        %1261 = vmatprep.mubr.bf16.mxu0 %v601
        %1262 = vmatmul.mubr.bf16.gmra.mrb[0].mxu0 %v600
        %v1263 = vpop.f32.mrb[0].mxu0
        %v1264 = vadd.f32 %v1211, %v1263
        %v1265 = vpop.f32.mrb[0].mxu0
        %v1266 = vpop.f32.mrb[0].mxu0
        %v1267 = vadd.f32 %v1211, %v1266
        %v1268 = vpop.f32.mrb[0].mxu0
        %1269 = vmatprep.mubr.bf16.mxu0 %v603
        %1270 = vmatmul.mubr.bf16.gmra.mrb[0].mxu0 %v602
        %v1271 = vpop.f32.mrb[0].mxu0
        %v1272 = vadd.f32 %v1211, %v1271
        %v1273 = vpop.f32.mrb[0].mxu0
        %v1274 = vpop.f32.mrb[0].mxu0
        %v1275 = vadd.f32 %v1211, %v1274
        %v1276 = vpop.f32.mrb[0].mxu0
        %1277 = vmatprep.mubr.bf16.mxu0 %v605
        %1278 = vmatmul.mubr.bf16.gmra.mrb[0].mxu0 %v604
        %v1279 = vpop.f32.mrb[0].mxu0
        %v1280 = vadd.f32 %v1211, %v1279
        %v1281 = vpop.f32.mrb[0].mxu0
        %v1282 = vpop.f32.mrb[0].mxu0
        %v1283 = vadd.f32 %v1211, %v1282
        %v1284 = vpop.f32.mrb[0].mxu0
        %1285 = vmatprep.mubr.bf16.mxu0 %v607
        %1286 = vmatmul.mubr.bf16.gmra.mrb[0].mxu0 %v606
        %v1287 = vpop.f32.mrb[0].mxu0
        %v1288 = vadd.f32 %v1211, %v1287
        %v1289 = vpop.f32.mrb[0].mxu0
        %v1290 = vpop.f32.mrb[0].mxu0
        %v1291 = vadd.f32 %v1211, %v1290
        %v1292 = vpop.f32.mrb[0].mxu0
        %1293 = vmatprep.mubr.bf16.mxu0 %v609
        %1294 = vmatmul.mubr.bf16.gmra.mrb[0].mxu0 %v608
        %v1295 = vpop.f32.mrb[0].mxu0
        %v1296 = vadd.f32 %v1211, %v1295
        %v1297 = vpop.f32.mrb[0].mxu0
        %v1298 = vpop.f32.mrb[0].mxu0
        %v1299 = vadd.f32 %v1211, %v1298
        %v1300 = vpop.f32.mrb[0].mxu0
        %1301 = vmatprep.mubr.bf16.mxu0 %v611
        %1302 = vmatmul.mubr.bf16.gmra.mrb[0].mxu0 %v610
        %v1303 = vpop.f32.mrb[0].mxu0
        %v1304 = vadd.f32 %v1211, %v1303
        %v1305 = vpop.f32.mrb[0].mxu0
        %v1306 = vpop.f32.mrb[0].mxu0
        %v1307 = vadd.f32 %v1211, %v1306
        %v1308 = vpop.f32.mrb[0].mxu0
        %1309 = vmatprep.mubr.bf16.mxu0 %v613
        %1310 = vmatmul.mubr.bf16.gmra.mrb[0].mxu0 %v612
        %v1311 = vpop.f32.mrb[0].mxu0
        %v1312 = vadd.f32 %v1211, %v1311
        %v1313 = vpop.f32.mrb[0].mxu0
        %v1314 = vpop.f32.mrb[0].mxu0
        %v1315 = vadd.f32 %v1211, %v1314
        %v1316 = vpop.f32.mrb[0].mxu0
        %1317 = vmatprep.mubr.bf16.mxu0 %v615
        %1318 = vmatmul.mubr.bf16.gmra.mrb[0].mxu0 %v614
        %v1319 = vpop.f32.mrb[0].mxu0
        %v1320 = vadd.f32 %v1211, %v1319
        %v1321 = vpop.f32.mrb[0].mxu0
        %v1322 = vpop.f32.mrb[0].mxu0
        %v1323 = vadd.f32 %v1211, %v1322
        %v1324 = vpop.f32.mrb[0].mxu0
        %1325 = vmatprep.mubr.bf16.mxu0 %v617
        %1326 = vmatmul.mubr.bf16.gmra.mrb[0].mxu0 %v616
        %v1327 = vpop.f32.mrb[0].mxu0
        %v1328 = vadd.f32 %v1211, %v1327
        %v1329 = vpop.f32.mrb[0].mxu0
        %v1330 = vpop.f32.mrb[0].mxu0
        %v1331 = vadd.f32 %v1211, %v1330
        %v1332 = vpop.f32.mrb[0].mxu0
        %1333 = vmatprep.mubr.bf16.mxu0 %v619
        %1334 = vmatmul.mubr.bf16.gmra.mrb[0].mxu0 %v618
        %v1335 = vpop.f32.mrb[0].mxu0
        %v1336 = vadd.f32 %v1211, %v1335
        %v1337 = vpop.f32.mrb[0].mxu0
        %v1338 = vpop.f32.mrb[0].mxu0
        %v1339 = vadd.f32 %v1211, %v1338
        %v1340 = vpop.f32.mrb[0].mxu0
        %1341 = vmatprep.mubr.bf16.mxu0 %v621
        %1342 = vmatmul.mubr.bf16.gmra.mrb[0].mxu0 %v620
        %v1343 = vpop.f32.mrb[0].mxu0
        %v1344 = vadd.f32 %v1211, %v1343
        %v1345 = vpop.f32.mrb[0].mxu0
        %v1346 = vpop.f32.mrb[0].mxu0
        %v1347 = vadd.f32 %v1211, %v1346
        %v1348 = vpop.f32.mrb[0].mxu0
        %1349 = vmatprep.mubr.bf16.mxu0 %v623
        %1350 = vmatmul.mubr.bf16.gmra.mrb[0].mxu0 %v622
        %v1351 = vpop.f32.mrb[0].mxu0
        %v1352 = vadd.f32 %v1211, %v1351
        %v1353 = vpop.f32.mrb[0].mxu0
        %v1354 = vpop.f32.mrb[0].mxu0
        %v1355 = vadd.f32 %v1211, %v1354
        %v1356 = vpop.f32.mrb[0].mxu0
        %1357 = vmatprep.mubr.bf16.mxu0 %v625
        %1358 = vmatmul.mubr.bf16.gmra.mrb[0].mxu0 %v624
        %v1359 = vpop.f32.mrb[0].mxu0
        %v1360 = vadd.f32 %v1211, %v1359
        %v1361 = vpop.f32.mrb[0].mxu0
        %v1362 = vpop.f32.mrb[0].mxu0
        %v1363 = vadd.f32 %v1211, %v1362
        %v1364 = vpop.f32.mrb[0].mxu0
        %1365 = vmatprep.mubr.bf16.mxu0 %v627
        %1366 = vmatmul.mubr.bf16.gmra.mrb[0].mxu0 %v626
        %v1367 = vpop.f32.mrb[0].mxu0
        %v1368 = vadd.f32 %v1211, %v1367
        %v1369 = vpop.f32.mrb[0].mxu0
        %v1370 = vpop.f32.mrb[0].mxu0
        %v1371 = vadd.f32 %v1211, %v1370
        %v1372 = vpop.f32.mrb[0].mxu0
        %1373 = vdwg.mxu0
        %v1374 = vmax.f32 %v1248, 0.0
        %v1375 = vmax.f32 %v1251, 0.0
        %v1376 = vmax.f32 %v1256, 0.0
        %v1377 = vmax.f32 %v1259, 0.0
        %v1378 = vmax.f32 %v1264, 0.0
        %v1379 = vmax.f32 %v1267, 0.0
        %v1380 = vmax.f32 %v1272, 0.0
        %v1381 = vmax.f32 %v1275, 0.0
        %v1382 = vmax.f32 %v1280, 0.0
        %v1383 = vmax.f32 %v1283, 0.0
        %v1384 = vmax.f32 %v1288, 0.0
        %v1385 = vmax.f32 %v1291, 0.0
        %v1386 = vmax.f32 %v1296, 0.0
        %v1387 = vmax.f32 %v1299, 0.0
        %v1388 = vmax.f32 %v1304, 0.0
        %v1389 = vmax.f32 %v1307, 0.0
        %v1390 = vmax.f32 %v1312, 0.0
        %v1391 = vmax.f32 %v1315, 0.0
        %v1392 = vmax.f32 %v1320, 0.0
        %v1393 = vmax.f32 %v1323, 0.0
        %v1394 = vmax.f32 %v1328, 0.0
        %v1395 = vmax.f32 %v1331, 0.0
        %v1396 = vmax.f32 %v1336, 0.0
        %v1397 = vmax.f32 %v1339, 0.0
        %v1398 = vmax.f32 %v1344, 0.0
        %v1399 = vmax.f32 %v1347, 0.0
        %v1400 = vmax.f32 %v1352, 0.0
        %v1401 = vmax.f32 %v1355, 0.0
        %v1402 = vmax.f32 %v1360, 0.0
        %v1403 = vmax.f32 %v1363, 0.0
        %v1404 = vmax.f32 %v1368, 0.0
        %v1405 = vmax.f32 %v1371, 0.0
        %v1406 = vld [vmem:[%s377] sm:$0xff]
        %v1407 = vpack.c.bf16 %v1375, %v1374
        %v1408 = vpack.c.bf16 %v1377, %v1376
        %v1409 = vpack.c.bf16 %v1379, %v1378
        %v1410 = vpack.c.bf16 %v1381, %v1380
        %v1411 = vpack.c.bf16 %v1383, %v1382
        %v1412 = vpack.c.bf16 %v1385, %v1384
        %v1413 = vpack.c.bf16 %v1387, %v1386
        %v1414 = vpack.c.bf16 %v1389, %v1388
        %v1415 = vpack.c.bf16 %v1391, %v1390
        %v1416 = vpack.c.bf16 %v1393, %v1392
        %v1417 = vpack.c.bf16 %v1395, %v1394
        %v1418 = vpack.c.bf16 %v1397, %v1396
        %v1419 = vpack.c.bf16 %v1399, %v1398
        %v1420 = vpack.c.bf16 %v1401, %v1400
        %v1421 = vpack.c.bf16 %v1403, %v1402
        %v1422 = vpack.c.bf16 %v1405, %v1404
        %v1424 = vunpack.c.l.b16 %v1406
        %v1425 = vunpack.c.h.b16 %v1406
        %v1426 = vpack.c.b16 %v1424, %v1424
        %v1427 = vpack.c.b16 %v1425, %v1425
        %1430 = vmatprep.subr.bf16.mxu0 0
        %1431 = vmatpush1.bf16.msra.mxu0 %v1407
        %1432 = vmatprep.subr.bf16.mxu0 0
        %1433 = vmatpush1.bf16.msra.mxu0 %v1408
        %1434 = vmatprep.subr.bf16.mxu0 0
        %1435 = vmatpush1.bf16.msra.mxu0 %v1409
        %1436 = vmatprep.subr.bf16.mxu0 0
        %1437 = vmatpush1.bf16.msra.mxu0 %v1410
        %1438 = vmatprep.subr.bf16.mxu0 0
        %1439 = vmatpush1.bf16.msra.mxu0 %v1411
        %1440 = vmatprep.subr.bf16.mxu0 0
        %1441 = vmatpush1.bf16.msra.mxu0 %v1412
        %1442 = vmatprep.subr.bf16.mxu0 0
        %1443 = vmatpush1.bf16.msra.mxu0 %v1413
        %1444 = vmatprep.subr.bf16.mxu0 0
        %1445 = vmatpush1.bf16.msra.mxu0 %v1414
        %1446 = vmatprep.subr.bf16.mxu0 0
        %1447 = vmatpush1.bf16.msra.mxu0 %v1415
        %1448 = vmatprep.subr.bf16.mxu0 0
        %1449 = vmatpush1.bf16.msra.mxu0 %v1416
        %1450 = vmatprep.subr.bf16.mxu0 0
        %1451 = vmatpush1.bf16.msra.mxu0 %v1417
        %1452 = vmatprep.subr.bf16.mxu0 0
        %1453 = vmatpush1.bf16.msra.mxu0 %v1418
        %1454 = vmatprep.subr.bf16.mxu0 0
        %1455 = vmatpush1.bf16.msra.mxu0 %v1419
        %1456 = vmatprep.subr.bf16.mxu0 0
        %1457 = vmatpush1.bf16.msra.mxu0 %v1420
        %1458 = vmatprep.subr.bf16.mxu0 0
        %1459 = vmatpush1.bf16.msra.mxu0 %v1421
        %1460 = vmatprep.subr.bf16.mxu0 0
        %1461 = vmatpush1.bf16.msra.mxu0 %v1422
        %1462 = vmatprep.mubr.bf16.mxu0 %v1427
        %1463 = vmatmul.mubr.bf16.gmra.mrb[0].mxu0 %v1426
        %v1464 = vpop.f32.mrb[0].mxu0
        %v1465 = vadd.f32 0.0, %v1464
        %v1466 = vpop.f32.mrb[0].mxu0
        %v1467 = vpop.f32.mrb[0].mxu0
        %v1468 = vpop.f32.mrb[0].mxu0
        %1469 = vdwg.mxu0
        %v1470 = vpack.c.bf16 %v1465, %v1465
        %v1471 = vld [vmem:[#allocation10] sm:$0xf]
        %v1472 = vld [vmem:[#allocation10 + $0x4] sm:$0xf]
        %v1473 = vld [vmem:[#allocation10 + $0x8] sm:$0xf]
        %v1474 = vld [vmem:[#allocation10 + $0xc] sm:$0xf]
        %v1475 = vld [vmem:[#allocation10 + $0x10] sm:$0xf]
        %v1476 = vld [vmem:[#allocation10 + $0x14] sm:$0xf]
        %v1477 = vld [vmem:[#allocation10 + $0x18] sm:$0xf]
        %v1478 = vld [vmem:[#allocation10 + $0x1c] sm:$0xf]
        %v1479 = vld [vmem:[#allocation10 + $0x20] sm:$0xf]
        %v1480 = vld [vmem:[#allocation10 + $0x24] sm:$0xf]
        %v1481 = vld [vmem:[#allocation10 + $0x28] sm:$0xf]
        %v1482 = vld [vmem:[#allocation10 + $0x2c] sm:$0xf]
        %v1483 = vld [vmem:[#allocation10 + $0x30] sm:$0xf]
        %v1484 = vld [vmem:[#allocation10 + $0x34] sm:$0xf]
        %v1485 = vld [vmem:[#allocation10 + $0x38] sm:$0xf]
        %v1486 = vld [vmem:[#allocation10 + $0x3c] sm:$0xf]
        %v1487 = vld [vmem:[%s7] sm:$0x1]
        %v1489 = vlaneseq
        %v1490 = vshrl.u32 %v1489, 7
        %v1491 = vsub.s32 0, %v1490
        %v1492 = vrot.slane %v1487, %v1491
        %v1510 = vunpack.c.l.b16 %v1471
        %v1511 = vunpack.c.l.b16 %v1472
        %v1512 = vunpack.c.l.b16 %v1473
        %v1513 = vunpack.c.l.b16 %v1474
        %v1514 = vunpack.c.l.b16 %v1475
        %v1515 = vunpack.c.l.b16 %v1476
        %v1516 = vunpack.c.l.b16 %v1477
        %v1517 = vunpack.c.l.b16 %v1478
        %v1518 = vunpack.c.l.b16 %v1479
        %v1519 = vunpack.c.l.b16 %v1480
        %v1520 = vunpack.c.l.b16 %v1481
        %v1521 = vunpack.c.l.b16 %v1482
        %v1522 = vunpack.c.l.b16 %v1483
        %v1523 = vunpack.c.l.b16 %v1484
        %v1524 = vunpack.c.l.b16 %v1485
        %v1525 = vunpack.c.l.b16 %v1486
        %v1526 = vpack.c.b16 %v1511, %v1510
        %v1527 = vpack.c.b16 %v1513, %v1512
        %v1528 = vpack.c.b16 %v1515, %v1514
        %v1529 = vpack.c.b16 %v1517, %v1516
        %v1530 = vpack.c.b16 %v1519, %v1518
        %v1531 = vpack.c.b16 %v1521, %v1520
        %v1532 = vpack.c.b16 %v1523, %v1522
        %v1533 = vpack.c.b16 %v1525, %v1524
        %1542 = vmatprep.subr.bf16.mxu0 0
        %1543 = vmatpush1.bf16.msra.mxu0 %v1526
        %1544 = vmatprep.subr.bf16.mxu0 0
        %1545 = vmatpush1.bf16.msra.mxu0 %v1527
        %1546 = vmatprep.subr.bf16.mxu0 0
        %1547 = vmatpush1.bf16.msra.mxu0 %v1528
        %1548 = vmatprep.subr.bf16.mxu0 0
        %1549 = vmatpush1.bf16.msra.mxu0 %v1529
        %1550 = vmatprep.subr.bf16.mxu0 0
        %1551 = vmatpush1.bf16.msra.mxu0 %v1530
        %1552 = vmatprep.subr.bf16.mxu0 0
        %1553 = vmatpush1.bf16.msra.mxu0 %v1531
        %1554 = vmatprep.subr.bf16.mxu0 0
        %1555 = vmatpush1.bf16.msra.mxu0 %v1532
        %1556 = vmatprep.subr.bf16.mxu0 0
        %1557 = vmatpush1.bf16.msra.mxu0 %v1533
        %1558 = vmatprep.subr.bf16.mxu0 0
        %1559 = vmatpush1.bf16.msra.mxu0 0
        %1560 = vmatprep.subr.bf16.mxu0 0
        %1561 = vmatpush1.bf16.msra.mxu0 0
        %1562 = vmatprep.subr.bf16.mxu0 0
        %1563 = vmatpush1.bf16.msra.mxu0 0
        %1564 = vmatprep.subr.bf16.mxu0 0
        %1565 = vmatpush1.bf16.msra.mxu0 0
        %1566 = vmatprep.subr.bf16.mxu0 0
        %1567 = vmatpush1.bf16.msra.mxu0 0
        %1568 = vmatprep.subr.bf16.mxu0 0
        %1569 = vmatpush1.bf16.msra.mxu0 0
        %1570 = vmatprep.subr.bf16.mxu0 0
        %1571 = vmatpush1.bf16.msra.mxu0 0
        %1572 = vmatprep.subr.bf16.mxu0 0
        %1573 = vmatpush1.bf16.msra.mxu0 0
        %1574 = vmatprep.mubr.bf16.mxu0 0
        %1575 = vmatmul.mubr.bf16.gmra.mrb[0].mxu0 %v1470
        %v1576 = vpop.f32.mrb[0].mxu0
        %v1577 = vadd.f32 %v1492, %v1576
        %v1578 = vpop.f32.mrb[0].mxu0
        %v1579 = vpop.f32.mrb[0].mxu0
        %v1580 = vpop.f32.mrb[0].mxu0
        %1581 = vdwg.mxu0
        %1582 = vst [vmem:[%s427] sm:$0xff] %v1577
        %s1583 = sand.u32 %s220, 1
        %s1584 = scalar_lea.sflag [#allocation4], %s1583
        %s1585 = sand.u32 %s220, 1
        %s1586 = smul.addr %s1585, 8
        %s1587 = scalar_lea.vmem [#allocation11], %s1586
        // Predicated region
        $region73: #{tpu_custom_call.1} parent=51 // pred_check
          %p1588 = pneg %p230
        $region74: #{tpu_custom_call.1} parent=51 // pred_check_branch
          %1590 = sbr.rel (%p1588) target = $region76
        $region75: #{tpu_custom_call.1} parent=51 // pred_region
          %s1592 = ssub.s32 128, 128
          %1593 = vsyncadd %s1584, %s1592
          %s1594 = smul.addr %s29, 128
          %s1595 = scalar_lea.hbm %s8, %s1594
          %s1597 = sshll.u32 %s1587, 4
          %s1598 = int_to_ptr.vmem [resolvable:$true] %s1597
          %1600 = dma.vmem_to_hbm [thread:$0]  %s1598, 128, %s1595, %s1584
        $region76: #{tpu_custom_call.1} parent=51 // pred_fallthru
          _
      $region52: #{tpu_custom_call.1} parent=5 // pred_fallthru
        _
      %p1601 = scmp.le.s32.totalorder 2, %s24
      // Predicated region
      $region77: #{tpu_custom_call.1} parent=5 // pred_check
        %p1602 = pneg %p1601
      $region78: #{tpu_custom_call.1} parent=5 // pred_check_branch
        %1604 = sbr.rel (%p1602) target = $region80
      $region79: #{tpu_custom_call.1} parent=5 // pred_region
        %s1605 = ssub.s32 %s24, 2
        // Predicated region
        $region81: #{tpu_custom_call.1} parent=79 // pred_check
          %p1606 = pneg %p236
        $region82: #{tpu_custom_call.1} parent=79 // pred_check_branch
          %1608 = sbr.rel (%p1606) target = $region84
        $region83: #{tpu_custom_call.1} parent=79 // pred_region
          %s1609 = sand.u32 %s221, 1
          %s1610 = scalar_lea.sflag [#allocation4], %s1609
          %s1611 = sand.u32 %s221, 1
          %s1612 = smul.addr %s1611, 8
          %s1613 = scalar_lea.vmem [#allocation11], %s1612
          %1614 = dma.done %s1610, 128
        $region84: #{tpu_custom_call.1} parent=79 // pred_fallthru
          _
      $region80: #{tpu_custom_call.1} parent=5 // pred_fallthru
        _
    $region6: #{tpu_custom_call.1} parent=1 // loop_footer
      %s28 = sadd.s32 1, %s24
    $region7: #{tpu_custom_call.1} parent=1 // loop_footer_branch
      %23 = sbr.rel target = $region3
    $region8: #{tpu_custom_call.1} parent=1 // loop_exit
      _
    %1615 = vsyncpa [#allocation3], 1
    %s1616 = scalar_lea.sflag [#allocation3], 1
    %1617 = vsyncpa %s1616, 1
    %1618 = vsyncpa [#allocation6], 1
    %s1619 = scalar_lea.sflag [#allocation6], 1
    %1620 = vsyncpa %s1619, 1
    %1621 = vsyncpa [#allocation9], 1
    %1622 = vsyncpa [#allocation4], 1
    %s1623 = scalar_lea.sflag [#allocation4], 1
    %1624 = vsyncpa %s1623, 1

</llo_original>
